<compile_context>
chip_gen: v7x
topology: tpu7x:2x2x1
jax: 0.10.0
libtpu: 0.0.40
codegen_flags: <defaults>
</compile_context>

<pallas_src>
import functools

import jax
import jax.numpy as jnp
from jax.experimental import pallas as pl
from jax.experimental.pallas import tpu as pltpu


def _head_loss_body(patches_ref, wconv_ref, gamma_ref, beta_ref,
                    wfc_ref, bfc_ref, lab_ref, n, hw):
    """One SCB head, computed entirely lane-dense on (C, M), M = N*H*W."""
    m_total = n * hw
    # --- fused 3x3 conv: single MXU matmul, bf16 operands, f32 accumulation ---
    conv_t = jnp.dot(wconv_ref[...], patches_ref[...],
                     preferred_element_type=jnp.float32)              # (C, M)
    ci = jnp.maximum(conv_t, 0.0)                                     # ReLU

    # --- per-batch pooling of ci as ONE MXU matmul vs an iota-built mask ---
    # mask[m, b] = 1/hw if pixel m belongs to batch b else 0  (batch-major M)
    iota_m = jax.lax.broadcasted_iota(jnp.int32, (m_total, n), 0)
    iota_b = jax.lax.broadcasted_iota(jnp.int32, (m_total, n), 1)
    lower = iota_b * hw
    in_batch = (iota_m >= lower) & (iota_m < lower + hw)
    pool_mask = jnp.where(in_batch, jnp.float32(1.0 / hw), jnp.float32(0.0))
    pb_mean = jnp.dot(ci, pool_mask,
                      preferred_element_type=jnp.float32)             # (C, N)

    # --- BatchNorm2d (training-mode biased stats) fused with the pool ---
    # bi over (C, M) is never materialized: pooled_bi follows from linearity.
    mean = jnp.mean(pb_mean, axis=1, keepdims=True)                   # (C, 1)
    s2 = jnp.sum(ci * ci, axis=1, keepdims=True) * (1.0 / m_total)    # (C, 1)
    var = jnp.maximum(s2 - mean * mean, 0.0)                          # guard rounding
    inv_std = jax.lax.rsqrt(var + 1e-5)
    pooled_bi = (pb_mean - mean) * (inv_std * gamma_ref[...]) + beta_ref[...]  # (C, N)

    # --- Linear(C -> num_class), transposed: (K, C) @ (C, N) + (K, 1) ---
    logits_t = jnp.dot(wfc_ref[...], pooled_bi,
                       preferred_element_type=jnp.float32) + bfc_ref[...]      # (K, N)

    # --- CrossEntropyLoss (mean over batch), along the class (sublane) axis ---
    kdim = logits_t.shape[0]
    mmax = jnp.max(logits_t, axis=0, keepdims=True)                   # (1, N)
    lse = mmax + jnp.log(jnp.sum(jnp.exp(logits_t - mmax), axis=0, keepdims=True))
    cls_ids = jax.lax.broadcasted_iota(jnp.int32, (kdim, n), 0)
    tgt = jnp.sum(jnp.where(cls_ids == lab_ref[...], logits_t, 0.0),
                  axis=0, keepdims=True)                              # (1, N)
    return jnp.sum(lse - tgt) * (1.0 / n)


def scb_fused_kernel(*refs, metas):
    """All SCB heads in one kernel; losses summed into one SMEM scalar."""
    lab_ref = refs[0]
    loss_ref = refs[-1]
    head_refs = refs[1:-1]
    total = jnp.float32(0.0)
    for h, (n, hw) in enumerate(metas):
        (patches_ref, wconv_ref, gamma_ref, beta_ref,
         wfc_ref, bfc_ref) = head_refs[6 * h:6 * h + 6]
        total = total + _head_loss_body(patches_ref, wconv_ref, gamma_ref,
                                        beta_ref, wfc_ref, bfc_ref, lab_ref,
                                        n, hw)
    loss_ref[0, 0] = total


def _build_head_inputs(feat_nchw, p):
    """Fused transposed im2col slab (9C, M) + transposed params for one head."""
    N, C, H, W = feat_nchw.shape
    M = N * H * W
    K = p["w_fc"].shape[1]
    # One transpose to channel-major, bf16 BEFORE pad/slice (half the bytes).
    x_cnhw = jnp.transpose(feat_nchw, (1, 0, 2, 3)).astype(jnp.bfloat16)
    xpad = jnp.pad(x_cnhw, ((0, 0), (0, 0), (1, 1), (1, 1)))
    # 9 taps as plain shifted slices (no per-tap transpose); M (pixels) on lanes.
    taps = [xpad[:, :, dy:dy + H, dx:dx + W].reshape(C, M)
            for dy in range(3) for dx in range(3)]
    patches_t = jnp.concatenate(taps, axis=0)                         # (9C, M) bf16
    # Conv weights (9, Cin, Cout) -> (Cout, 9*Cin), matching patch row order.
    wconv_t = jnp.transpose(p["w_conv"], (2, 0, 1)).reshape(C, 9 * C).astype(jnp.bfloat16)
    head_inputs = (patches_t, wconv_t,
                   p["gamma"].reshape(C, 1).astype(jnp.float32),
                   p["beta"].reshape(C, 1).astype(jnp.float32),
                   p["w_fc"].T.astype(jnp.float32),
                   p["b_fc"].reshape(K, 1).astype(jnp.float32))
    return head_inputs, (N, H * W)


@jax.jit
def scb_classifier_forward(feats_nchw, y, params, scb_loss_penalty):
    """Equivalent of SCBClassifier.forward(feats, y): one XLA program,
    one fused pallas_call for all heads."""
    labels_1n = y.reshape(1, -1).astype(jnp.int32)
    flat_inputs = [labels_1n]
    metas = []
    for name, feat in feats_nchw.items():
        head_inputs, meta = _build_head_inputs(feat, params[name])
        flat_inputs.extend(head_inputs)
        metas.append(meta)

    vmem = pl.BlockSpec(memory_space=pltpu.MemorySpace.VMEM)
    kernel = functools.partial(scb_fused_kernel, metas=tuple(metas))
    loss = pl.pallas_call(
        kernel,
        out_shape=jax.ShapeDtypeStruct((1, 1), jnp.float32),
        in_specs=[vmem] * len(flat_inputs),
        out_specs=pl.BlockSpec(memory_space=pltpu.MemorySpace.SMEM),
    )(*flat_inputs)
    return loss[0, 0] * scb_loss_penalty


# --------------------- pure-JAX reference (for verification) ----------------
def ref_head_loss(x_nhwc, w_conv, gamma, beta, w_fc, b_fc, y):
    N, H, W, C = x_nhwc.shape
    w_hwio = w_conv.reshape(3, 3, C, C)
    conv = jax.lax.conv_general_dilated(
        x_nhwc, w_hwio, window_strides=(1, 1), padding="SAME",
        dimension_numbers=("NHWC", "HWIO", "NHWC"))
    ci = jnp.maximum(conv, 0.0)
    mean = jnp.mean(ci, axis=(0, 1, 2), keepdims=True)
    var = jnp.mean((ci - mean) ** 2, axis=(0, 1, 2), keepdims=True)
    bi = (ci - mean) / jnp.sqrt(var + 1e-5) * gamma + beta
    pooled = jnp.mean(bi, axis=(1, 2))
    logits = pooled @ w_fc + b_fc
    lse = jax.scipy.special.logsumexp(logits, axis=-1)
    tgt = jnp.take_along_axis(logits, y[:, None], axis=-1)[:, 0]
    return jnp.mean(lse - tgt)


def init_params(key, channel_map, num_class):
    params = {}
    for name, C in channel_map.items():
        key, k1, k2, k3, k4, k5 = jax.random.split(key, 6)
        params[name] = dict(
            w_conv=jax.random.normal(k1, (9, C, C), jnp.float32) / (3.0 * C ** 0.5),
            gamma=1.0 + 0.1 * jax.random.normal(k2, (C,), jnp.float32),
            beta=0.1 * jax.random.normal(k3, (C,), jnp.float32),
            w_fc=jax.random.normal(k4, (C, num_class), jnp.float32) * C ** -0.5,
            b_fc=0.01 * jax.random.normal(k5, (num_class,), jnp.float32),
        )
    return params


if __name__ == "__main__":
    num_class = 10
    scb_loss_penalty = 0.5
    batch = 2

    # Two SCB feature taps (as from BasicBlocks of a small resnet), NCHW.
    channel_map = {"layer1_0": 8, "layer2_0": 16}
    feat_shapes = {"layer1_0": (batch, 8, 16, 16),
                   "layer2_0": (batch, 16, 8, 8)}

    key = jax.random.PRNGKey(0)
    key, kf1, kf2, ky, kp = jax.random.split(key, 5)
    feats = {
        "layer1_0": jax.random.normal(kf1, feat_shapes["layer1_0"], jnp.float32),
        "layer2_0": jax.random.normal(kf2, feat_shapes["layer2_0"], jnp.float32),
    }
    y = jax.random.randint(ky, (batch,), 0, num_class)
    params = init_params(kp, channel_map, num_class)

    loss = jax.block_until_ready(
        scb_classifier_forward(feats, y, params, scb_loss_penalty))

    # Verify against a pure-f32 JAX reference of the same forward math.
    # (Kernel uses bf16 conv operands with f32 accumulation, so tolerance is
    # relaxed vs a pure-f32 comparison.)
    ref = jnp.float32(0.0)
    for name, feat in feats.items():
        p = params[name]
        ref = ref + ref_head_loss(jnp.transpose(feat, (0, 2, 3, 1)),
                                  p["w_conv"], p["gamma"], p["beta"],
                                  p["w_fc"], p["b_fc"], y)
    ref = ref * scb_loss_penalty
    assert jnp.abs(loss - ref) < 2e-2 * max(1.0, float(jnp.abs(ref))), (loss, ref)

    print("KERNEL_OK")
</pallas_src>

<mosaic_0001>
module attributes {stable_mosaic.version = 11 : i64} {
  func.func @scb_fused_kernel(%arg0: memref<1x2xi32, #tpu.memory_space<vmem>>, %arg1: memref<72x512xbf16, #tpu.memory_space<vmem>>, %arg2: memref<8x72xbf16, #tpu.memory_space<vmem>>, %arg3: memref<8x1xf32, #tpu.memory_space<vmem>>, %arg4: memref<8x1xf32, #tpu.memory_space<vmem>>, %arg5: memref<10x8xf32, #tpu.memory_space<vmem>>, %arg6: memref<10x1xf32, #tpu.memory_space<vmem>>, %arg7: memref<144x128xbf16, #tpu.memory_space<vmem>>, %arg8: memref<16x144xbf16, #tpu.memory_space<vmem>>, %arg9: memref<16x1xf32, #tpu.memory_space<vmem>>, %arg10: memref<16x1xf32, #tpu.memory_space<vmem>>, %arg11: memref<10x16xf32, #tpu.memory_space<vmem>>, %arg12: memref<10x1xf32, #tpu.memory_space<vmem>>, %arg13: memref<1x1xf32, #tpu.memory_space<smem>>) attributes {dimension_semantics = [], scalar_prefetch = 0 : i64, scratch_operands = 0 : i64, tpu.core_type = #tpu.core_type<tc>} {
    %c0 = arith.constant 0 : index
    %c0_0 = arith.constant 0 : index
    %0 = vector.load %arg2[%c0, %c0_0] : memref<8x72xbf16, #tpu.memory_space<vmem>>, vector<8x72xbf16>
    %c0_1 = arith.constant 0 : index
    %c0_2 = arith.constant 0 : index
    %1 = vector.load %arg1[%c0_1, %c0_2] : memref<72x512xbf16, #tpu.memory_space<vmem>>, vector<72x512xbf16>
    %cst = arith.constant dense<0.000000e+00> : vector<8x512xf32>
    %2 = tpu.matmul %0, %1, %cst {dimension_numbers = #tpu.dot_dimension_numbers<[1], [0], [0], [1], [0, 0, 1, 1], [], []>} : vector<8x72xbf16>, vector<72x512xbf16>, vector<8x512xf32> -> vector<8x512xf32>
    %cst_3 = arith.constant 0.000000e+00 : f32
    %3 = vector.broadcast %cst_3 : f32 to vector<8x512xf32>
    %4 = arith.maximumf %2, %3 : vector<8x512xf32>
    %5 = tpu.iota {dimensions = array<i32: 0>} : vector<512x2xi32>
    %6 = tpu.iota {dimensions = array<i32: 1>} : vector<512x2xi32>
    %c256_i32 = arith.constant 256 : i32
    %7 = vector.broadcast %c256_i32 : i32 to vector<512x2xi32>
    %8 = arith.muli %6, %7 : vector<512x2xi32>
    %9 = arith.cmpi sge, %5, %8 : vector<512x2xi32>
    %c256_i32_4 = arith.constant 256 : i32
    %10 = vector.broadcast %c256_i32_4 : i32 to vector<512x2xi32>
    %11 = arith.addi %8, %10 : vector<512x2xi32>
    %12 = arith.cmpi slt, %5, %11 : vector<512x2xi32>
    %13 = arith.andi %9, %12 : vector<512x2xi1>
    %cst_5 = arith.constant 3.906250e-03 : f32
    %cst_6 = arith.constant 0.000000e+00 : f32
    %14 = vector.broadcast %cst_5 : f32 to vector<512x2xf32>
    %15 = vector.broadcast %cst_6 : f32 to vector<512x2xf32>
    %16 = arith.select %13, %14, %15 : vector<512x2xi1>, vector<512x2xf32>
    %cst_7 = arith.constant dense<0.000000e+00> : vector<8x2xf32>
    %17 = tpu.matmul %4, %16, %cst_7 {dimension_numbers = #tpu.dot_dimension_numbers<[1], [0], [0], [1], [0, 0, 1, 1], [], []>} : vector<8x512xf32>, vector<512x2xf32>, vector<8x2xf32> -> vector<8x2xf32>
    %cst_8 = arith.constant dense<0.000000e+00> : vector<8xf32>
    %18 = vector.multi_reduction <add>, %17, %cst_8 [1] : vector<8x2xf32> to vector<8xf32>
    %19 = vector.shape_cast %18 : vector<8xf32> to vector<8x1xf32>
    %cst_9 = arith.constant 2.000000e+00 : f32
    %20 = vector.broadcast %cst_9 : f32 to vector<8x1xf32>
    %21 = arith.divf %19, %20 : vector<8x1xf32>
    %22 = arith.mulf %4, %4 : vector<8x512xf32>
    %cst_10 = arith.constant dense<0.000000e+00> : vector<8xf32>
    %23 = vector.multi_reduction <add>, %22, %cst_10 [1] : vector<8x512xf32> to vector<8xf32>
    %24 = vector.shape_cast %23 : vector<8xf32> to vector<8x1xf32>
    %cst_11 = arith.constant 0.001953125 : f32
    %25 = vector.broadcast %cst_11 : f32 to vector<8x1xf32>
    %26 = arith.mulf %24, %25 : vector<8x1xf32>
    %27 = arith.mulf %21, %21 : vector<8x1xf32>
    %28 = arith.subf %26, %27 : vector<8x1xf32>
    %cst_12 = arith.constant 0.000000e+00 : f32
    %29 = vector.broadcast %cst_12 : f32 to vector<8x1xf32>
    %30 = arith.maximumf %28, %29 : vector<8x1xf32>
    %cst_13 = arith.constant 9.99999974E-6 : f32
    %31 = vector.broadcast %cst_13 : f32 to vector<8x1xf32>
    %32 = arith.addf %30, %31 : vector<8x1xf32>
    %33 = math.rsqrt %32 : vector<8x1xf32>
    %34 = vector.broadcast %21 : vector<8x1xf32> to vector<8x2xf32>
    %35 = arith.subf %17, %34 : vector<8x2xf32>
    %c0_14 = arith.constant 0 : index
    %c0_15 = arith.constant 0 : index
    %36 = vector.load %arg3[%c0_14, %c0_15] : memref<8x1xf32, #tpu.memory_space<vmem>>, vector<8x1xf32>
    %37 = arith.mulf %33, %36 : vector<8x1xf32>
    %38 = vector.broadcast %37 : vector<8x1xf32> to vector<8x2xf32>
    %39 = arith.mulf %35, %38 : vector<8x2xf32>
    %c0_16 = arith.constant 0 : index
    %c0_17 = arith.constant 0 : index
    %40 = vector.load %arg4[%c0_16, %c0_17] : memref<8x1xf32, #tpu.memory_space<vmem>>, vector<8x1xf32>
    %41 = vector.broadcast %40 : vector<8x1xf32> to vector<8x2xf32>
    %42 = arith.addf %39, %41 : vector<8x2xf32>
    %c0_18 = arith.constant 0 : index
    %c0_19 = arith.constant 0 : index
    %43 = vector.load %arg5[%c0_18, %c0_19] : memref<10x8xf32, #tpu.memory_space<vmem>>, vector<10x8xf32>
    %cst_20 = arith.constant dense<0.000000e+00> : vector<10x2xf32>
    %44 = tpu.matmul %43, %42, %cst_20 {dimension_numbers = #tpu.dot_dimension_numbers<[1], [0], [0], [1], [0, 0, 1, 1], [], []>} : vector<10x8xf32>, vector<8x2xf32>, vector<10x2xf32> -> vector<10x2xf32>
    %c0_21 = arith.constant 0 : index
    %c0_22 = arith.constant 0 : index
    %45 = vector.load %arg6[%c0_21, %c0_22] : memref<10x1xf32, #tpu.memory_space<vmem>>, vector<10x1xf32>
    %46 = vector.broadcast %45 : vector<10x1xf32> to vector<10x2xf32>
    %47 = arith.addf %44, %46 : vector<10x2xf32>
    %cst_23 = arith.constant dense<0xFF800000> : vector<2xf32>
    %48 = vector.multi_reduction <maximumf>, %47, %cst_23 [0] : vector<10x2xf32> to vector<2xf32>
    %49 = vector.shape_cast %48 : vector<2xf32> to vector<1x2xf32>
    %50 = vector.broadcast %49 : vector<1x2xf32> to vector<10x2xf32>
    %51 = arith.subf %47, %50 : vector<10x2xf32>
    %52 = math.exp %51 : vector<10x2xf32>
    %cst_24 = arith.constant dense<0.000000e+00> : vector<2xf32>
    %53 = vector.multi_reduction <add>, %52, %cst_24 [0] : vector<10x2xf32> to vector<2xf32>
    %54 = vector.shape_cast %53 : vector<2xf32> to vector<1x2xf32>
    %55 = math.log %54 : vector<1x2xf32>
    %56 = arith.addf %49, %55 : vector<1x2xf32>
    %57 = tpu.iota {dimensions = array<i32: 0>} : vector<10x2xi32>
    %c0_25 = arith.constant 0 : index
    %c0_26 = arith.constant 0 : index
    %58 = vector.load %arg0[%c0_25, %c0_26] : memref<1x2xi32, #tpu.memory_space<vmem>>, vector<1x2xi32>
    %59 = vector.broadcast %58 : vector<1x2xi32> to vector<10x2xi32>
    %60 = arith.cmpi eq, %57, %59 : vector<10x2xi32>
    %cst_27 = arith.constant 0.000000e+00 : f32
    %61 = vector.broadcast %cst_27 : f32 to vector<10x2xf32>
    %62 = arith.select %60, %47, %61 : vector<10x2xi1>, vector<10x2xf32>
    %cst_28 = arith.constant dense<0.000000e+00> : vector<2xf32>
    %63 = vector.multi_reduction <add>, %62, %cst_28 [0] : vector<10x2xf32> to vector<2xf32>
    %64 = vector.shape_cast %63 : vector<2xf32> to vector<1x2xf32>
    %65 = arith.subf %56, %64 : vector<1x2xf32>
    %66 = vector.shape_cast %65 : vector<1x2xf32> to vector<1x1x2xf32>
    %cst_29 = arith.constant dense<0.000000e+00> : vector<1xf32>
    %67 = vector.multi_reduction <add>, %66, %cst_29 [1, 2] : vector<1x1x2xf32> to vector<1xf32>
    %68 = vector.shape_cast %67 : vector<1xf32> to vector<1x1x1xf32>
    %69 = vector.extract %68[0, 0, 0] : f32 from vector<1x1x1xf32>
    %cst_30 = arith.constant 5.000000e-01 : f32
    %70 = arith.mulf %69, %cst_30 : f32
    %cst_31 = arith.constant 0.000000e+00 : f32
    %71 = arith.addf %cst_31, %70 : f32
    %c0_32 = arith.constant 0 : index
    %c0_33 = arith.constant 0 : index
    %72 = vector.load %arg8[%c0_32, %c0_33] : memref<16x144xbf16, #tpu.memory_space<vmem>>, vector<16x144xbf16>
    %c0_34 = arith.constant 0 : index
    %c0_35 = arith.constant 0 : index
    %73 = vector.load %arg7[%c0_34, %c0_35] : memref<144x128xbf16, #tpu.memory_space<vmem>>, vector<144x128xbf16>
    %cst_36 = arith.constant dense<0.000000e+00> : vector<16x128xf32>
    %74 = tpu.matmul %72, %73, %cst_36 {dimension_numbers = #tpu.dot_dimension_numbers<[1], [0], [0], [1], [0, 0, 1, 1], [], []>} : vector<16x144xbf16>, vector<144x128xbf16>, vector<16x128xf32> -> vector<16x128xf32>
    %cst_37 = arith.constant 0.000000e+00 : f32
    %75 = vector.broadcast %cst_37 : f32 to vector<16x128xf32>
    %76 = arith.maximumf %74, %75 : vector<16x128xf32>
    %77 = tpu.iota {dimensions = array<i32: 0>} : vector<128x2xi32>
    %78 = tpu.iota {dimensions = array<i32: 1>} : vector<128x2xi32>
    %c64_i32 = arith.constant 64 : i32
    %79 = vector.broadcast %c64_i32 : i32 to vector<128x2xi32>
    %80 = arith.muli %78, %79 : vector<128x2xi32>
    %81 = arith.cmpi sge, %77, %80 : vector<128x2xi32>
    %c64_i32_38 = arith.constant 64 : i32
    %82 = vector.broadcast %c64_i32_38 : i32 to vector<128x2xi32>
    %83 = arith.addi %80, %82 : vector<128x2xi32>
    %84 = arith.cmpi slt, %77, %83 : vector<128x2xi32>
    %85 = arith.andi %81, %84 : vector<128x2xi1>
    %cst_39 = arith.constant 1.562500e-02 : f32
    %cst_40 = arith.constant 0.000000e+00 : f32
    %86 = vector.broadcast %cst_39 : f32 to vector<128x2xf32>
    %87 = vector.broadcast %cst_40 : f32 to vector<128x2xf32>
    %88 = arith.select %85, %86, %87 : vector<128x2xi1>, vector<128x2xf32>
    %cst_41 = arith.constant dense<0.000000e+00> : vector<16x2xf32>
    %89 = tpu.matmul %76, %88, %cst_41 {dimension_numbers = #tpu.dot_dimension_numbers<[1], [0], [0], [1], [0, 0, 1, 1], [], []>} : vector<16x128xf32>, vector<128x2xf32>, vector<16x2xf32> -> vector<16x2xf32>
    %cst_42 = arith.constant dense<0.000000e+00> : vector<16xf32>
    %90 = vector.multi_reduction <add>, %89, %cst_42 [1] : vector<16x2xf32> to vector<16xf32>
    %91 = vector.shape_cast %90 : vector<16xf32> to vector<16x1xf32>
    %cst_43 = arith.constant 2.000000e+00 : f32
    %92 = vector.broadcast %cst_43 : f32 to vector<16x1xf32>
    %93 = arith.divf %91, %92 : vector<16x1xf32>
    %94 = arith.mulf %76, %76 : vector<16x128xf32>
    %cst_44 = arith.constant dense<0.000000e+00> : vector<16xf32>
    %95 = vector.multi_reduction <add>, %94, %cst_44 [1] : vector<16x128xf32> to vector<16xf32>
    %96 = vector.shape_cast %95 : vector<16xf32> to vector<16x1xf32>
    %cst_45 = arith.constant 7.812500e-03 : f32
    %97 = vector.broadcast %cst_45 : f32 to vector<16x1xf32>
    %98 = arith.mulf %96, %97 : vector<16x1xf32>
    %99 = arith.mulf %93, %93 : vector<16x1xf32>
    %100 = arith.subf %98, %99 : vector<16x1xf32>
    %cst_46 = arith.constant 0.000000e+00 : f32
    %101 = vector.broadcast %cst_46 : f32 to vector<16x1xf32>
    %102 = arith.maximumf %100, %101 : vector<16x1xf32>
    %cst_47 = arith.constant 9.99999974E-6 : f32
    %103 = vector.broadcast %cst_47 : f32 to vector<16x1xf32>
    %104 = arith.addf %102, %103 : vector<16x1xf32>
    %105 = math.rsqrt %104 : vector<16x1xf32>
    %106 = vector.broadcast %93 : vector<16x1xf32> to vector<16x2xf32>
    %107 = arith.subf %89, %106 : vector<16x2xf32>
    %c0_48 = arith.constant 0 : index
    %c0_49 = arith.constant 0 : index
    %108 = vector.load %arg9[%c0_48, %c0_49] : memref<16x1xf32, #tpu.memory_space<vmem>>, vector<16x1xf32>
    %109 = arith.mulf %105, %108 : vector<16x1xf32>
    %110 = vector.broadcast %109 : vector<16x1xf32> to vector<16x2xf32>
    %111 = arith.mulf %107, %110 : vector<16x2xf32>
    %c0_50 = arith.constant 0 : index
    %c0_51 = arith.constant 0 : index
    %112 = vector.load %arg10[%c0_50, %c0_51] : memref<16x1xf32, #tpu.memory_space<vmem>>, vector<16x1xf32>
    %113 = vector.broadcast %112 : vector<16x1xf32> to vector<16x2xf32>
    %114 = arith.addf %111, %113 : vector<16x2xf32>
    %c0_52 = arith.constant 0 : index
    %c0_53 = arith.constant 0 : index
    %115 = vector.load %arg11[%c0_52, %c0_53] : memref<10x16xf32, #tpu.memory_space<vmem>>, vector<10x16xf32>
    %cst_54 = arith.constant dense<0.000000e+00> : vector<10x2xf32>
    %116 = tpu.matmul %115, %114, %cst_54 {dimension_numbers = #tpu.dot_dimension_numbers<[1], [0], [0], [1], [0, 0, 1, 1], [], []>} : vector<10x16xf32>, vector<16x2xf32>, vector<10x2xf32> -> vector<10x2xf32>
    %c0_55 = arith.constant 0 : index
    %c0_56 = arith.constant 0 : index
    %117 = vector.load %arg12[%c0_55, %c0_56] : memref<10x1xf32, #tpu.memory_space<vmem>>, vector<10x1xf32>
    %118 = vector.broadcast %117 : vector<10x1xf32> to vector<10x2xf32>
    %119 = arith.addf %116, %118 : vector<10x2xf32>
    %cst_57 = arith.constant dense<0xFF800000> : vector<2xf32>
    %120 = vector.multi_reduction <maximumf>, %119, %cst_57 [0] : vector<10x2xf32> to vector<2xf32>
    %121 = vector.shape_cast %120 : vector<2xf32> to vector<1x2xf32>
    %122 = vector.broadcast %121 : vector<1x2xf32> to vector<10x2xf32>
    %123 = arith.subf %119, %122 : vector<10x2xf32>
    %124 = math.exp %123 : vector<10x2xf32>
    %cst_58 = arith.constant dense<0.000000e+00> : vector<2xf32>
    %125 = vector.multi_reduction <add>, %124, %cst_58 [0] : vector<10x2xf32> to vector<2xf32>
    %126 = vector.shape_cast %125 : vector<2xf32> to vector<1x2xf32>
    %127 = math.log %126 : vector<1x2xf32>
    %128 = arith.addf %121, %127 : vector<1x2xf32>
    %129 = tpu.iota {dimensions = array<i32: 0>} : vector<10x2xi32>
    %c0_59 = arith.constant 0 : index
    %c0_60 = arith.constant 0 : index
    %130 = vector.load %arg0[%c0_59, %c0_60] : memref<1x2xi32, #tpu.memory_space<vmem>>, vector<1x2xi32>
    %131 = vector.broadcast %130 : vector<1x2xi32> to vector<10x2xi32>
    %132 = arith.cmpi eq, %129, %131 : vector<10x2xi32>
    %cst_61 = arith.constant 0.000000e+00 : f32
    %133 = vector.broadcast %cst_61 : f32 to vector<10x2xf32>
    %134 = arith.select %132, %119, %133 : vector<10x2xi1>, vector<10x2xf32>
    %cst_62 = arith.constant dense<0.000000e+00> : vector<2xf32>
    %135 = vector.multi_reduction <add>, %134, %cst_62 [0] : vector<10x2xf32> to vector<2xf32>
    %136 = vector.shape_cast %135 : vector<2xf32> to vector<1x2xf32>
    %137 = arith.subf %128, %136 : vector<1x2xf32>
    %138 = vector.shape_cast %137 : vector<1x2xf32> to vector<1x1x2xf32>
    %cst_63 = arith.constant dense<0.000000e+00> : vector<1xf32>
    %139 = vector.multi_reduction <add>, %138, %cst_63 [1, 2] : vector<1x1x2xf32> to vector<1xf32>
    %140 = vector.shape_cast %139 : vector<1xf32> to vector<1x1x1xf32>
    %141 = vector.extract %140[0, 0, 0] : f32 from vector<1x1x1xf32>
    %cst_64 = arith.constant 5.000000e-01 : f32
    %142 = arith.mulf %141, %cst_64 : f32
    %143 = arith.addf %71, %142 : f32
    %c0_65 = arith.constant 0 : index
    %c0_66 = arith.constant 0 : index
    %144 = memref.load %arg13[%c0_65, %c0_66] : memref<1x1xf32, #tpu.memory_space<smem>>
    memref.store %143, %arg13[%c0_65, %c0_66] : memref<1x1xf32, #tpu.memory_space<smem>>
    return
  }
}

</mosaic_0001>

<llo_original>
// kernel: scb_classifier_forward.1
$region0: #{scb_classifier_forward.1}
  #allocation0 [shape = 'u32[]', space=smem, size = 0x4, offset = 0x4, fixed_abs, tag = 'smem constant byte address 0x4 - core index']
  #allocation1 [shape = 'u32[144,128]{1,0:T(1,128)}', space=vmem, size = 0x12000, scoped, tag = 'internal scratch']
  %s0 = inlined_call_operand.vmem [shape: s32[1,2], index: 0, kind: input, shape index: {}]
  %s1 = inlined_call_operand.vmem [shape: bf16[72,512], index: 1, kind: input, shape index: {}]
  %s2 = inlined_call_operand.vmem [shape: bf16[8,72], index: 2, kind: input, shape index: {}]
  %s3 = inlined_call_operand.vmem [shape: f32[8,1], index: 3, kind: input, shape index: {}]
  %s4 = inlined_call_operand.vmem [shape: f32[8,1], index: 4, kind: input, shape index: {}]
  %s5 = inlined_call_operand.vmem [shape: f32[10,8], index: 5, kind: input, shape index: {}]
  %s6 = inlined_call_operand.vmem [shape: f32[10,1], index: 6, kind: input, shape index: {}]
  %s7 = inlined_call_operand.vmem [shape: bf16[144,128], index: 7, kind: input, shape index: {}]
  %s8 = inlined_call_operand.vmem [shape: bf16[16,144], index: 8, kind: input, shape index: {}]
  %s9 = inlined_call_operand.vmem [shape: f32[16,1], index: 9, kind: input, shape index: {}]
  %s10 = inlined_call_operand.vmem [shape: f32[16,1], index: 10, kind: input, shape index: {}]
  %s11 = inlined_call_operand.vmem [shape: f32[10,16], index: 11, kind: input, shape index: {}]
  %s12 = inlined_call_operand.vmem [shape: f32[10,1], index: 12, kind: input, shape index: {}]
  %s13 = inlined_call_operand.hbm [shape: f32[1,1], index: 13, kind: output, shape index: {}]
  %s14 = sld [smem:[#allocation0]]
  $region62: #{scb_classifier_forward.1} parent=0
    _
  %s16 = ssub.s32 1, %s14
  %s17 = scalar_select 0, %s16, %s14
  $region1: #{scb_classifier_forward.1} parent=0
    #allocation2 [shape = 'u8[512]{0}', space=smem, size = 0x200, scoped, tag = 'output window, operand 0, single buffered']
    #allocation3 [shape = 's32[1]{0}', space=sflag, size = 0x4, scoped, tag = 'scoped memory for scb_classifier_forward.1']
    %18 = vsyncpa [#allocation3], 0
    // Predicated region
    $region2: #{scb_classifier_forward.1} parent=1 // pred_check
      _
    $region3: #{scb_classifier_forward.1} parent=1 // pred_check_branch
      %20 = sbr.rel (0) target = $region5
    $region4: #{scb_classifier_forward.1} parent=1 // pred_region
      _
    $region5: #{scb_classifier_forward.1} parent=1 // pred_fallthru
      _
    // Predicated region
    $region6: #{scb_classifier_forward.1} parent=1 // pred_check
      _
    $region7: #{scb_classifier_forward.1} parent=1 // pred_check_branch
      %22 = sbr.rel (0) target = $region9
    $region8: #{scb_classifier_forward.1} parent=1 // pred_region
      _
    $region9: #{scb_classifier_forward.1} parent=1 // pred_fallthru
      _
    // Predicated region
    $region10: #{scb_classifier_forward.1} parent=1 // pred_check
      _
    $region11: #{scb_classifier_forward.1} parent=1 // pred_check_branch
      %24 = sbr.rel (0) target = $region13
    $region12: #{scb_classifier_forward.1} parent=1 // pred_region
      _
    $region13: #{scb_classifier_forward.1} parent=1 // pred_fallthru
      _
    // Predicated region
    $region14: #{scb_classifier_forward.1} parent=1 // pred_check
      _
    $region15: #{scb_classifier_forward.1} parent=1 // pred_check_branch
      %26 = sbr.rel (0) target = $region17
    $region16: #{scb_classifier_forward.1} parent=1 // pred_region
      _
    $region17: #{scb_classifier_forward.1} parent=1 // pred_fallthru
      _
    // Predicated region
    $region18: #{scb_classifier_forward.1} parent=1 // pred_check
      _
    $region19: #{scb_classifier_forward.1} parent=1 // pred_check_branch
      %28 = sbr.rel (0) target = $region21
    $region20: #{scb_classifier_forward.1} parent=1 // pred_region
      _
    $region21: #{scb_classifier_forward.1} parent=1 // pred_fallthru
      _
    // Predicated region
    $region22: #{scb_classifier_forward.1} parent=1 // pred_check
      _
    $region23: #{scb_classifier_forward.1} parent=1 // pred_check_branch
      %30 = sbr.rel (0) target = $region25
    $region24: #{scb_classifier_forward.1} parent=1 // pred_region
      _
    $region25: #{scb_classifier_forward.1} parent=1 // pred_fallthru
      _
    // Predicated region
    $region26: #{scb_classifier_forward.1} parent=1 // pred_check
      _
    $region27: #{scb_classifier_forward.1} parent=1 // pred_check_branch
      %32 = sbr.rel (0) target = $region29
    $region28: #{scb_classifier_forward.1} parent=1 // pred_region
      _
    $region29: #{scb_classifier_forward.1} parent=1 // pred_fallthru
      _
    // Predicated region
    $region30: #{scb_classifier_forward.1} parent=1 // pred_check
      _
    $region31: #{scb_classifier_forward.1} parent=1 // pred_check_branch
      %34 = sbr.rel (0) target = $region33
    $region32: #{scb_classifier_forward.1} parent=1 // pred_region
      _
    $region33: #{scb_classifier_forward.1} parent=1 // pred_fallthru
      _
    // Predicated region
    $region34: #{scb_classifier_forward.1} parent=1 // pred_check
      _
    $region35: #{scb_classifier_forward.1} parent=1 // pred_check_branch
      %36 = sbr.rel (0) target = $region37
    $region36: #{scb_classifier_forward.1} parent=1 // pred_region
      _
    $region37: #{scb_classifier_forward.1} parent=1 // pred_fallthru
      _
    // Predicated region
    $region38: #{scb_classifier_forward.1} parent=1 // pred_check
      _
    $region39: #{scb_classifier_forward.1} parent=1 // pred_check_branch
      %38 = sbr.rel (0) target = $region41
    $region40: #{scb_classifier_forward.1} parent=1 // pred_region
      _
    $region41: #{scb_classifier_forward.1} parent=1 // pred_fallthru
      _
    // Predicated region
    $region42: #{scb_classifier_forward.1} parent=1 // pred_check
      _
    $region43: #{scb_classifier_forward.1} parent=1 // pred_check_branch
      %40 = sbr.rel (0) target = $region45
    $region44: #{scb_classifier_forward.1} parent=1 // pred_region
      _
    $region45: #{scb_classifier_forward.1} parent=1 // pred_fallthru
      _
    // Predicated region
    $region46: #{scb_classifier_forward.1} parent=1 // pred_check
      _
    $region47: #{scb_classifier_forward.1} parent=1 // pred_check_branch
      %42 = sbr.rel (0) target = $region49
    $region48: #{scb_classifier_forward.1} parent=1 // pred_region
      _
    $region49: #{scb_classifier_forward.1} parent=1 // pred_fallthru
      _
    // Predicated region
    $region50: #{scb_classifier_forward.1} parent=1 // pred_check
      _
    $region51: #{scb_classifier_forward.1} parent=1 // pred_check_branch
      %44 = sbr.rel (0) target = $region53
    $region52: #{scb_classifier_forward.1} parent=1 // pred_region
      _
    $region53: #{scb_classifier_forward.1} parent=1 // pred_fallthru
      _
    %v46 = vld [vmem:[%s2] sm:$0xf]
    %v47 = vld [vmem:[%s1] sm:$0xff]
    %v48 = vld [vmem:[%s1 + $0x8] sm:$0xff]
    %v49 = vld [vmem:[%s1 + $0x10] sm:$0xff]
    %v50 = vld [vmem:[%s1 + $0x18] sm:$0xff]
    %v51 = vld [vmem:[%s1 + $0x20] sm:$0xff]
    %v52 = vld [vmem:[%s1 + $0x28] sm:$0xff]
    %v53 = vld [vmem:[%s1 + $0x30] sm:$0xff]
    %v54 = vld [vmem:[%s1 + $0x38] sm:$0xff]
    %v55 = vld [vmem:[%s1 + $0x40] sm:$0xff]
    %v56 = vld [vmem:[%s1 + $0x48] sm:$0xff]
    %v57 = vld [vmem:[%s1 + $0x50] sm:$0xff]
    %v58 = vld [vmem:[%s1 + $0x58] sm:$0xff]
    %v59 = vld [vmem:[%s1 + $0x60] sm:$0xff]
    %v60 = vld [vmem:[%s1 + $0x68] sm:$0xff]
    %v61 = vld [vmem:[%s1 + $0x70] sm:$0xff]
    %v62 = vld [vmem:[%s1 + $0x78] sm:$0xff]
    %v63 = vld [vmem:[%s1 + $0x80] sm:$0xff]
    %v64 = vld [vmem:[%s1 + $0x88] sm:$0xff]
    %v83 = vunpack.c.l.b16 %v47
    %v84 = vunpack.c.h.b16 %v47
    %v85 = vunpack.c.l.b16 %v48
    %v86 = vunpack.c.h.b16 %v48
    %v87 = vunpack.c.l.b16 %v49
    %v88 = vunpack.c.h.b16 %v49
    %v89 = vunpack.c.l.b16 %v50
    %v90 = vunpack.c.h.b16 %v50
    %v91 = vunpack.c.l.b16 %v51
    %v92 = vunpack.c.h.b16 %v51
    %v93 = vunpack.c.l.b16 %v52
    %v94 = vunpack.c.h.b16 %v52
    %v95 = vunpack.c.l.b16 %v53
    %v96 = vunpack.c.h.b16 %v53
    %v97 = vunpack.c.l.b16 %v54
    %v98 = vunpack.c.h.b16 %v54
    %v99 = vunpack.c.l.b16 %v55
    %v100 = vunpack.c.h.b16 %v55
    %v101 = vunpack.c.l.b16 %v56
    %v102 = vunpack.c.h.b16 %v56
    %v103 = vunpack.c.l.b16 %v57
    %v104 = vunpack.c.h.b16 %v57
    %v105 = vunpack.c.l.b16 %v58
    %v106 = vunpack.c.h.b16 %v58
    %v107 = vunpack.c.l.b16 %v59
    %v108 = vunpack.c.h.b16 %v59
    %v109 = vunpack.c.l.b16 %v60
    %v110 = vunpack.c.h.b16 %v60
    %v111 = vunpack.c.l.b16 %v61
    %v112 = vunpack.c.h.b16 %v61
    %v113 = vunpack.c.l.b16 %v62
    %v114 = vunpack.c.h.b16 %v62
    %v115 = vunpack.c.l.b16 %v63
    %v116 = vunpack.c.h.b16 %v63
    %v117 = vunpack.c.l.b16 %v64
    %v118 = vunpack.c.h.b16 %v64
    %v119 = vpack.c.b16 %v87, %v83
    %v120 = vpack.c.b16 %v88, %v84
    %v121 = vpack.c.b16 %v89, %v85
    %v122 = vpack.c.b16 %v90, %v86
    %v123 = vpack.c.b16 %v95, %v91
    %v124 = vpack.c.b16 %v96, %v92
    %v125 = vpack.c.b16 %v97, %v93
    %v126 = vpack.c.b16 %v98, %v94
    %v127 = vpack.c.b16 %v103, %v99
    %v128 = vpack.c.b16 %v104, %v100
    %v129 = vpack.c.b16 %v105, %v101
    %v130 = vpack.c.b16 %v106, %v102
    %v131 = vpack.c.b16 %v111, %v107
    %v132 = vpack.c.b16 %v112, %v108
    %v133 = vpack.c.b16 %v113, %v109
    %v134 = vpack.c.b16 %v114, %v110
    %v135 = vpack.c.b16 %v115, %v115
    %v136 = vpack.c.b16 %v116, %v116
    %v137 = vpack.c.b16 %v117, %v117
    %v138 = vpack.c.b16 %v118, %v118
    %vm155 = vcmask 588800
    %v157 = vsel %vm155, %v46, 0
    %vm159 = vcmask 1043456
    %v161 = vsel %vm159, %v135, 0
    %v164 = vsel %vm159, %v136, 0
    %v167 = vsel %vm159, %v137, 0
    %v170 = vsel %vm159, %v138, 0
    %172 = vmatprep.subr.bf16.mxu0 %v120
    %173 = vmatpush1.bf16.msra.mxu0 %v119
    %174 = vmatprep.subr.bf16.mxu0 %v124
    %175 = vmatpush1.bf16.msra.mxu0 %v123
    %176 = vmatprep.subr.bf16.mxu0 %v128
    %177 = vmatpush1.bf16.msra.mxu0 %v127
    %178 = vmatprep.subr.bf16.mxu0 %v132
    %179 = vmatpush1.bf16.msra.mxu0 %v131
    %180 = vmatprep.subr.bf16.mxu0 %v164
    %181 = vmatpush1.bf16.msra.mxu0 %v161
    %182 = vmatprep.subr.bf16.mxu0 0
    %183 = vmatpush1.bf16.msra.mxu0 0
    %184 = vmatprep.subr.bf16.mxu0 0
    %185 = vmatpush1.bf16.msra.mxu0 0
    %186 = vmatprep.subr.bf16.mxu0 0
    %187 = vmatpush1.bf16.msra.mxu0 0
    %188 = vmatprep.subr.bf16.mxu0 0
    %189 = vmatpush1.bf16.msra.mxu0 0
    %190 = vmatprep.subr.bf16.mxu0 0
    %191 = vmatpush1.bf16.msra.mxu0 0
    %192 = vmatprep.subr.bf16.mxu0 0
    %193 = vmatpush1.bf16.msra.mxu0 0
    %194 = vmatprep.subr.bf16.mxu0 0
    %195 = vmatpush1.bf16.msra.mxu0 0
    %196 = vmatprep.subr.bf16.mxu0 0
    %197 = vmatpush1.bf16.msra.mxu0 0
    %198 = vmatprep.subr.bf16.mxu0 0
    %199 = vmatpush1.bf16.msra.mxu0 0
    %200 = vmatprep.subr.bf16.mxu0 0
    %201 = vmatpush1.bf16.msra.mxu0 0
    %202 = vmatprep.subr.bf16.mxu0 0
    %203 = vmatpush1.bf16.msra.mxu0 0
    %204 = vmatprep.mubr.bf16.mxu0 0
    %205 = vmatmul.mubr.bf16.gmra.mrb[0].mxu0 %v157
    %v206 = vpop.f32.mrb[0].mxu0
    %v207 = vadd.f32 0.0, %v206
    %v208 = vpop.f32.mrb[0].mxu0
    %v209 = vadd.f32 0.0, %v208
    %v210 = vpop.f32.mrb[0].mxu0
    %v211 = vpop.f32.mrb[0].mxu0
    %212 = vdwg.mxu0
    %213 = vmatprep.subr.bf16.mxu0 %v122
    %214 = vmatpush1.bf16.msra.mxu0 %v121
    %215 = vmatprep.subr.bf16.mxu0 %v126
    %216 = vmatpush1.bf16.msra.mxu0 %v125
    %217 = vmatprep.subr.bf16.mxu0 %v130
    %218 = vmatpush1.bf16.msra.mxu0 %v129
    %219 = vmatprep.subr.bf16.mxu0 %v134
    %220 = vmatpush1.bf16.msra.mxu0 %v133
    %221 = vmatprep.subr.bf16.mxu0 %v170
    %222 = vmatpush1.bf16.msra.mxu0 %v167
    %223 = vmatprep.subr.bf16.mxu0 0
    %224 = vmatpush1.bf16.msra.mxu0 0
    %225 = vmatprep.subr.bf16.mxu0 0
    %226 = vmatpush1.bf16.msra.mxu0 0
    %227 = vmatprep.subr.bf16.mxu0 0
    %228 = vmatpush1.bf16.msra.mxu0 0
    %229 = vmatprep.subr.bf16.mxu0 0
    %230 = vmatpush1.bf16.msra.mxu0 0
    %231 = vmatprep.subr.bf16.mxu0 0
    %232 = vmatpush1.bf16.msra.mxu0 0
    %233 = vmatprep.subr.bf16.mxu0 0
    %234 = vmatpush1.bf16.msra.mxu0 0
    %235 = vmatprep.subr.bf16.mxu0 0
    %236 = vmatpush1.bf16.msra.mxu0 0
    %237 = vmatprep.subr.bf16.mxu0 0
    %238 = vmatpush1.bf16.msra.mxu0 0
    %239 = vmatprep.subr.bf16.mxu0 0
    %240 = vmatpush1.bf16.msra.mxu0 0
    %241 = vmatprep.subr.bf16.mxu0 0
    %242 = vmatpush1.bf16.msra.mxu0 0
    %243 = vmatprep.subr.bf16.mxu0 0
    %244 = vmatpush1.bf16.msra.mxu0 0
    %245 = vmatprep.mubr.bf16.mxu0 0
    %246 = vmatmul.mubr.bf16.gmra.mrb[0].mxu0 %v157
    %v247 = vpop.f32.mrb[0].mxu0
    %v248 = vadd.f32 0.0, %v247
    %v249 = vpop.f32.mrb[0].mxu0
    %v250 = vadd.f32 0.0, %v249
    %v251 = vpop.f32.mrb[0].mxu0
    %v252 = vpop.f32.mrb[0].mxu0
    %253 = vdwg.mxu0
    %v254 = vmax.f32 %v207, 0.0
    %v255 = vmax.f32 %v209, 0.0
    %v256 = vmax.f32 %v248, 0.0
    %v257 = vmax.f32 %v250, 0.0
    %v258 = vlaneseq
    %v259 = vshrl.u32 %v258, 7
    %v260 = vadd.s32 %v259, 8
    %v261 = vadd.s32 %v259, 16
    %v262 = vadd.s32 %v259, 24
    %v263 = vadd.s32 %v259, 32
    %v264 = vadd.s32 %v259, 40
    %v265 = vadd.s32 %v259, 48
    %v266 = vadd.s32 %v259, 56
    %v267 = vadd.s32 %v259, 64
    %v268 = vadd.s32 %v259, 72
    %v269 = vadd.s32 %v259, 80
    %v270 = vadd.s32 %v259, 88
    %v271 = vadd.s32 %v259, 96
    %v272 = vadd.s32 %v259, 104
    %v273 = vadd.s32 %v259, 112
    %v274 = vadd.s32 %v259, 120
    %v275 = vadd.s32 %v259, 128
    %v276 = vadd.s32 %v259, 136
    %v277 = vadd.s32 %v259, 144
    %v278 = vadd.s32 %v259, 152
    %v279 = vadd.s32 %v259, 160
    %v280 = vadd.s32 %v259, 168
    %v281 = vadd.s32 %v259, 176
    %v282 = vadd.s32 %v259, 184
    %v283 = vadd.s32 %v259, 192
    %v284 = vadd.s32 %v259, 200
    %v285 = vadd.s32 %v259, 208
    %v286 = vadd.s32 %v259, 216
    %v287 = vadd.s32 %v259, 224
    %v288 = vadd.s32 %v259, 232
    %v289 = vadd.s32 %v259, 240
    %v290 = vadd.s32 %v259, 248
    %v291 = vadd.s32 %v259, 256
    %v292 = vadd.s32 %v259, 264
    %v293 = vadd.s32 %v259, 272
    %v294 = vadd.s32 %v259, 280
    %v295 = vadd.s32 %v259, 288
    %v296 = vadd.s32 %v259, 296
    %v297 = vadd.s32 %v259, 304
    %v298 = vadd.s32 %v259, 312
    %v299 = vadd.s32 %v259, 320
    %v300 = vadd.s32 %v259, 328
    %v301 = vadd.s32 %v259, 336
    %v302 = vadd.s32 %v259, 344
    %v303 = vadd.s32 %v259, 352
    %v304 = vadd.s32 %v259, 360
    %v305 = vadd.s32 %v259, 368
    %v306 = vadd.s32 %v259, 376
    %v307 = vadd.s32 %v259, 384
    %v308 = vadd.s32 %v259, 392
    %v309 = vadd.s32 %v259, 400
    %v310 = vadd.s32 %v259, 408
    %v311 = vadd.s32 %v259, 416
    %v312 = vadd.s32 %v259, 424
    %v313 = vadd.s32 %v259, 432
    %v314 = vadd.s32 %v259, 440
    %v315 = vadd.s32 %v259, 448
    %v316 = vadd.s32 %v259, 456
    %v317 = vadd.s32 %v259, 464
    %v318 = vadd.s32 %v259, 472
    %v319 = vadd.s32 %v259, 480
    %v320 = vadd.s32 %v259, 488
    %v321 = vadd.s32 %v259, 496
    %v322 = vadd.s32 %v259, 504
    %v323 = vlaneseq
    %v324 = vand.u32 %v323, 127
    %v325 = vmul.u32 %v324, 256
    %vm326 = vcmp.ge.s32.totalorder %v259, %v325
    %vm327 = vcmp.ge.s32.totalorder %v260, %v325
    %vm328 = vcmp.ge.s32.totalorder %v261, %v325
    %vm329 = vcmp.ge.s32.totalorder %v262, %v325
    %vm330 = vcmp.ge.s32.totalorder %v263, %v325
    %vm331 = vcmp.ge.s32.totalorder %v264, %v325
    %vm332 = vcmp.ge.s32.totalorder %v265, %v325
    %vm333 = vcmp.ge.s32.totalorder %v266, %v325
    %vm334 = vcmp.ge.s32.totalorder %v267, %v325
    %vm335 = vcmp.ge.s32.totalorder %v268, %v325
    %vm336 = vcmp.ge.s32.totalorder %v269, %v325
    %vm337 = vcmp.ge.s32.totalorder %v270, %v325
    %vm338 = vcmp.ge.s32.totalorder %v271, %v325
    %vm339 = vcmp.ge.s32.totalorder %v272, %v325
    %vm340 = vcmp.ge.s32.totalorder %v273, %v325
    %vm341 = vcmp.ge.s32.totalorder %v274, %v325
    %vm342 = vcmp.ge.s32.totalorder %v275, %v325
    %vm343 = vcmp.ge.s32.totalorder %v276, %v325
    %vm344 = vcmp.ge.s32.totalorder %v277, %v325
    %vm345 = vcmp.ge.s32.totalorder %v278, %v325
    %vm346 = vcmp.ge.s32.totalorder %v279, %v325
    %vm347 = vcmp.ge.s32.totalorder %v280, %v325
    %vm348 = vcmp.ge.s32.totalorder %v281, %v325
    %vm349 = vcmp.ge.s32.totalorder %v282, %v325
    %vm350 = vcmp.ge.s32.totalorder %v283, %v325
    %vm351 = vcmp.ge.s32.totalorder %v284, %v325
    %vm352 = vcmp.ge.s32.totalorder %v285, %v325
    %vm353 = vcmp.ge.s32.totalorder %v286, %v325
    %vm354 = vcmp.ge.s32.totalorder %v287, %v325
    %vm355 = vcmp.ge.s32.totalorder %v288, %v325
    %vm356 = vcmp.ge.s32.totalorder %v289, %v325
    %vm357 = vcmp.ge.s32.totalorder %v290, %v325
    %vm358 = vcmp.ge.s32.totalorder %v291, %v325
    %vm359 = vcmp.ge.s32.totalorder %v292, %v325
    %vm360 = vcmp.ge.s32.totalorder %v293, %v325
    %vm361 = vcmp.ge.s32.totalorder %v294, %v325
    %vm362 = vcmp.ge.s32.totalorder %v295, %v325
    %vm363 = vcmp.ge.s32.totalorder %v296, %v325
    %vm364 = vcmp.ge.s32.totalorder %v297, %v325
    %vm365 = vcmp.ge.s32.totalorder %v298, %v325
    %vm366 = vcmp.ge.s32.totalorder %v299, %v325
    %vm367 = vcmp.ge.s32.totalorder %v300, %v325
    %vm368 = vcmp.ge.s32.totalorder %v301, %v325
    %vm369 = vcmp.ge.s32.totalorder %v302, %v325
    %vm370 = vcmp.ge.s32.totalorder %v303, %v325
    %vm371 = vcmp.ge.s32.totalorder %v304, %v325
    %vm372 = vcmp.ge.s32.totalorder %v305, %v325
    %vm373 = vcmp.ge.s32.totalorder %v306, %v325
    %vm374 = vcmp.ge.s32.totalorder %v307, %v325
    %vm375 = vcmp.ge.s32.totalorder %v308, %v325
    %vm376 = vcmp.ge.s32.totalorder %v309, %v325
    %vm377 = vcmp.ge.s32.totalorder %v310, %v325
    %vm378 = vcmp.ge.s32.totalorder %v311, %v325
    %vm379 = vcmp.ge.s32.totalorder %v312, %v325
    %vm380 = vcmp.ge.s32.totalorder %v313, %v325
    %vm381 = vcmp.ge.s32.totalorder %v314, %v325
    %vm382 = vcmp.ge.s32.totalorder %v315, %v325
    %vm383 = vcmp.ge.s32.totalorder %v316, %v325
    %vm384 = vcmp.ge.s32.totalorder %v317, %v325
    %vm385 = vcmp.ge.s32.totalorder %v318, %v325
    %vm386 = vcmp.ge.s32.totalorder %v319, %v325
    %vm387 = vcmp.ge.s32.totalorder %v320, %v325
    %vm388 = vcmp.ge.s32.totalorder %v321, %v325
    %vm389 = vcmp.ge.s32.totalorder %v322, %v325
    %v390 = vadd.s32 %v325, 256
    %vm391 = vcmp.lt.s32.totalorder %v259, %v390
    %vm392 = vcmp.lt.s32.totalorder %v260, %v390
    %vm393 = vcmp.lt.s32.totalorder %v261, %v390
    %vm394 = vcmp.lt.s32.totalorder %v262, %v390
    %vm395 = vcmp.lt.s32.totalorder %v263, %v390
    %vm396 = vcmp.lt.s32.totalorder %v264, %v390
    %vm397 = vcmp.lt.s32.totalorder %v265, %v390
    %vm398 = vcmp.lt.s32.totalorder %v266, %v390
    %vm399 = vcmp.lt.s32.totalorder %v267, %v390
    %vm400 = vcmp.lt.s32.totalorder %v268, %v390
    %vm401 = vcmp.lt.s32.totalorder %v269, %v390
    %vm402 = vcmp.lt.s32.totalorder %v270, %v390
    %vm403 = vcmp.lt.s32.totalorder %v271, %v390
    %vm404 = vcmp.lt.s32.totalorder %v272, %v390
    %vm405 = vcmp.lt.s32.totalorder %v273, %v390
    %vm406 = vcmp.lt.s32.totalorder %v274, %v390
    %vm407 = vcmp.lt.s32.totalorder %v275, %v390
    %vm408 = vcmp.lt.s32.totalorder %v276, %v390
    %vm409 = vcmp.lt.s32.totalorder %v277, %v390
    %vm410 = vcmp.lt.s32.totalorder %v278, %v390
    %vm411 = vcmp.lt.s32.totalorder %v279, %v390
    %vm412 = vcmp.lt.s32.totalorder %v280, %v390
    %vm413 = vcmp.lt.s32.totalorder %v281, %v390
    %vm414 = vcmp.lt.s32.totalorder %v282, %v390
    %vm415 = vcmp.lt.s32.totalorder %v283, %v390
    %vm416 = vcmp.lt.s32.totalorder %v284, %v390
    %vm417 = vcmp.lt.s32.totalorder %v285, %v390
    %vm418 = vcmp.lt.s32.totalorder %v286, %v390
    %vm419 = vcmp.lt.s32.totalorder %v287, %v390
    %vm420 = vcmp.lt.s32.totalorder %v288, %v390
    %vm421 = vcmp.lt.s32.totalorder %v289, %v390
    %vm422 = vcmp.lt.s32.totalorder %v290, %v390
    %vm423 = vcmp.lt.s32.totalorder %v291, %v390
    %vm424 = vcmp.lt.s32.totalorder %v292, %v390
    %vm425 = vcmp.lt.s32.totalorder %v293, %v390
    %vm426 = vcmp.lt.s32.totalorder %v294, %v390
    %vm427 = vcmp.lt.s32.totalorder %v295, %v390
    %vm428 = vcmp.lt.s32.totalorder %v296, %v390
    %vm429 = vcmp.lt.s32.totalorder %v297, %v390
    %vm430 = vcmp.lt.s32.totalorder %v298, %v390
    %vm431 = vcmp.lt.s32.totalorder %v299, %v390
    %vm432 = vcmp.lt.s32.totalorder %v300, %v390
    %vm433 = vcmp.lt.s32.totalorder %v301, %v390
    %vm434 = vcmp.lt.s32.totalorder %v302, %v390
    %vm435 = vcmp.lt.s32.totalorder %v303, %v390
    %vm436 = vcmp.lt.s32.totalorder %v304, %v390
    %vm437 = vcmp.lt.s32.totalorder %v305, %v390
    %vm438 = vcmp.lt.s32.totalorder %v306, %v390
    %vm439 = vcmp.lt.s32.totalorder %v307, %v390
    %vm440 = vcmp.lt.s32.totalorder %v308, %v390
    %vm441 = vcmp.lt.s32.totalorder %v309, %v390
    %vm442 = vcmp.lt.s32.totalorder %v310, %v390
    %vm443 = vcmp.lt.s32.totalorder %v311, %v390
    %vm444 = vcmp.lt.s32.totalorder %v312, %v390
    %vm445 = vcmp.lt.s32.totalorder %v313, %v390
    %vm446 = vcmp.lt.s32.totalorder %v314, %v390
    %vm447 = vcmp.lt.s32.totalorder %v315, %v390
    %vm448 = vcmp.lt.s32.totalorder %v316, %v390
    %vm449 = vcmp.lt.s32.totalorder %v317, %v390
    %vm450 = vcmp.lt.s32.totalorder %v318, %v390
    %vm451 = vcmp.lt.s32.totalorder %v319, %v390
    %vm452 = vcmp.lt.s32.totalorder %v320, %v390
    %vm453 = vcmp.lt.s32.totalorder %v321, %v390
    %vm454 = vcmp.lt.s32.totalorder %v322, %v390
    %vm455 = vmand %vm326, %vm391
    %vm456 = vmand %vm327, %vm392
    %vm457 = vmand %vm328, %vm393
    %vm458 = vmand %vm329, %vm394
    %vm459 = vmand %vm330, %vm395
    %vm460 = vmand %vm331, %vm396
    %vm461 = vmand %vm332, %vm397
    %vm462 = vmand %vm333, %vm398
    %vm463 = vmand %vm334, %vm399
    %vm464 = vmand %vm335, %vm400
    %vm465 = vmand %vm336, %vm401
    %vm466 = vmand %vm337, %vm402
    %vm467 = vmand %vm338, %vm403
    %vm468 = vmand %vm339, %vm404
    %vm469 = vmand %vm340, %vm405
    %vm470 = vmand %vm341, %vm406
    %vm471 = vmand %vm342, %vm407
    %vm472 = vmand %vm343, %vm408
    %vm473 = vmand %vm344, %vm409
    %vm474 = vmand %vm345, %vm410
    %vm475 = vmand %vm346, %vm411
    %vm476 = vmand %vm347, %vm412
    %vm477 = vmand %vm348, %vm413
    %vm478 = vmand %vm349, %vm414
    %vm479 = vmand %vm350, %vm415
    %vm480 = vmand %vm351, %vm416
    %vm481 = vmand %vm352, %vm417
    %vm482 = vmand %vm353, %vm418
    %vm483 = vmand %vm354, %vm419
    %vm484 = vmand %vm355, %vm420
    %vm485 = vmand %vm356, %vm421
    %vm486 = vmand %vm357, %vm422
    %vm487 = vmand %vm358, %vm423
    %vm488 = vmand %vm359, %vm424
    %vm489 = vmand %vm360, %vm425
    %vm490 = vmand %vm361, %vm426
    %vm491 = vmand %vm362, %vm427
    %vm492 = vmand %vm363, %vm428
    %vm493 = vmand %vm364, %vm429
    %vm494 = vmand %vm365, %vm430
    %vm495 = vmand %vm366, %vm431
    %vm496 = vmand %vm367, %vm432
    %vm497 = vmand %vm368, %vm433
    %vm498 = vmand %vm369, %vm434
    %vm499 = vmand %vm370, %vm435
    %vm500 = vmand %vm371, %vm436
    %vm501 = vmand %vm372, %vm437
    %vm502 = vmand %vm373, %vm438
    %vm503 = vmand %vm374, %vm439
    %vm504 = vmand %vm375, %vm440
    %vm505 = vmand %vm376, %vm441
    %vm506 = vmand %vm377, %vm442
    %vm507 = vmand %vm378, %vm443
    %vm508 = vmand %vm379, %vm444
    %vm509 = vmand %vm380, %vm445
    %vm510 = vmand %vm381, %vm446
    %vm511 = vmand %vm382, %vm447
    %vm512 = vmand %vm383, %vm448
    %vm513 = vmand %vm384, %vm449
    %vm514 = vmand %vm385, %vm450
    %vm515 = vmand %vm386, %vm451
    %vm516 = vmand %vm387, %vm452
    %vm517 = vmand %vm388, %vm453
    %vm518 = vmand %vm389, %vm454
    %v519 = vsel %vm455, 0.00390625, 0.0
    %v520 = vsel %vm456, 0.00390625, 0.0
    %v521 = vsel %vm457, 0.00390625, 0.0
    %v522 = vsel %vm458, 0.00390625, 0.0
    %v523 = vsel %vm459, 0.00390625, 0.0
    %v524 = vsel %vm460, 0.00390625, 0.0
    %v525 = vsel %vm461, 0.00390625, 0.0
    %v526 = vsel %vm462, 0.00390625, 0.0
    %v527 = vsel %vm463, 0.00390625, 0.0
    %v528 = vsel %vm464, 0.00390625, 0.0
    %v529 = vsel %vm465, 0.00390625, 0.0
    %v530 = vsel %vm466, 0.00390625, 0.0
    %v531 = vsel %vm467, 0.00390625, 0.0
    %v532 = vsel %vm468, 0.00390625, 0.0
    %v533 = vsel %vm469, 0.00390625, 0.0
    %v534 = vsel %vm470, 0.00390625, 0.0
    %v535 = vsel %vm471, 0.00390625, 0.0
    %v536 = vsel %vm472, 0.00390625, 0.0
    %v537 = vsel %vm473, 0.00390625, 0.0
    %v538 = vsel %vm474, 0.00390625, 0.0
    %v539 = vsel %vm475, 0.00390625, 0.0
    %v540 = vsel %vm476, 0.00390625, 0.0
    %v541 = vsel %vm477, 0.00390625, 0.0
    %v542 = vsel %vm478, 0.00390625, 0.0
    %v543 = vsel %vm479, 0.00390625, 0.0
    %v544 = vsel %vm480, 0.00390625, 0.0
    %v545 = vsel %vm481, 0.00390625, 0.0
    %v546 = vsel %vm482, 0.00390625, 0.0
    %v547 = vsel %vm483, 0.00390625, 0.0
    %v548 = vsel %vm484, 0.00390625, 0.0
    %v549 = vsel %vm485, 0.00390625, 0.0
    %v550 = vsel %vm486, 0.00390625, 0.0
    %v551 = vsel %vm487, 0.00390625, 0.0
    %v552 = vsel %vm488, 0.00390625, 0.0
    %v553 = vsel %vm489, 0.00390625, 0.0
    %v554 = vsel %vm490, 0.00390625, 0.0
    %v555 = vsel %vm491, 0.00390625, 0.0
    %v556 = vsel %vm492, 0.00390625, 0.0
    %v557 = vsel %vm493, 0.00390625, 0.0
    %v558 = vsel %vm494, 0.00390625, 0.0
    %v559 = vsel %vm495, 0.00390625, 0.0
    %v560 = vsel %vm496, 0.00390625, 0.0
    %v561 = vsel %vm497, 0.00390625, 0.0
    %v562 = vsel %vm498, 0.00390625, 0.0
    %v563 = vsel %vm499, 0.00390625, 0.0
    %v564 = vsel %vm500, 0.00390625, 0.0
    %v565 = vsel %vm501, 0.00390625, 0.0
    %v566 = vsel %vm502, 0.00390625, 0.0
    %v567 = vsel %vm503, 0.00390625, 0.0
    %v568 = vsel %vm504, 0.00390625, 0.0
    %v569 = vsel %vm505, 0.00390625, 0.0
    %v570 = vsel %vm506, 0.00390625, 0.0
    %v571 = vsel %vm507, 0.00390625, 0.0
    %v572 = vsel %vm508, 0.00390625, 0.0
    %v573 = vsel %vm509, 0.00390625, 0.0
    %v574 = vsel %vm510, 0.00390625, 0.0
    %v575 = vsel %vm511, 0.00390625, 0.0
    %v576 = vsel %vm512, 0.00390625, 0.0
    %v577 = vsel %vm513, 0.00390625, 0.0
    %v578 = vsel %vm514, 0.00390625, 0.0
    %v579 = vsel %vm515, 0.00390625, 0.0
    %v580 = vsel %vm516, 0.00390625, 0.0
    %v581 = vsel %vm517, 0.00390625, 0.0
    %v582 = vsel %vm518, 0.00390625, 0.0
    %583 = vmatprep.subr.mxu0 0.0
    %584 = vmatpush1.msra.mxu0 %v519
    %585 = vmatprep.subr.mxu0 0.0
    %586 = vmatpush1.msra.mxu0 %v520
    %587 = vmatprep.subr.mxu0 0.0
    %588 = vmatpush1.msra.mxu0 %v521
    %589 = vmatprep.subr.mxu0 0.0
    %590 = vmatpush1.msra.mxu0 %v522
    %591 = vmatprep.subr.mxu0 0.0
    %592 = vmatpush1.msra.mxu0 %v523
    %593 = vmatprep.subr.mxu0 0.0
    %594 = vmatpush1.msra.mxu0 %v524
    %595 = vmatprep.subr.mxu0 0.0
    %596 = vmatpush1.msra.mxu0 %v525
    %597 = vmatprep.subr.mxu0 0.0
    %598 = vmatpush1.msra.mxu0 %v526
    %599 = vmatprep.subr.mxu0 0.0
    %600 = vmatpush1.msra.mxu0 %v527
    %601 = vmatprep.subr.mxu0 0.0
    %602 = vmatpush1.msra.mxu0 %v528
    %603 = vmatprep.subr.mxu0 0.0
    %604 = vmatpush1.msra.mxu0 %v529
    %605 = vmatprep.subr.mxu0 0.0
    %606 = vmatpush1.msra.mxu0 %v530
    %607 = vmatprep.subr.mxu0 0.0
    %608 = vmatpush1.msra.mxu0 %v531
    %609 = vmatprep.subr.mxu0 0.0
    %610 = vmatpush1.msra.mxu0 %v532
    %611 = vmatprep.subr.mxu0 0.0
    %612 = vmatpush1.msra.mxu0 %v533
    %613 = vmatprep.subr.mxu0 0.0
    %614 = vmatpush1.msra.mxu0 %v534
    %615 = vmatprep.subr.mxu0 0.0
    %616 = vmatpush1.msra.mxu0 %v535
    %617 = vmatprep.subr.mxu0 0.0
    %618 = vmatpush1.msra.mxu0 %v536
    %619 = vmatprep.subr.mxu0 0.0
    %620 = vmatpush1.msra.mxu0 %v537
    %621 = vmatprep.subr.mxu0 0.0
    %622 = vmatpush1.msra.mxu0 %v538
    %623 = vmatprep.subr.mxu0 0.0
    %624 = vmatpush1.msra.mxu0 %v539
    %625 = vmatprep.subr.mxu0 0.0
    %626 = vmatpush1.msra.mxu0 %v540
    %627 = vmatprep.subr.mxu0 0.0
    %628 = vmatpush1.msra.mxu0 %v541
    %629 = vmatprep.subr.mxu0 0.0
    %630 = vmatpush1.msra.mxu0 %v542
    %631 = vmatprep.subr.mxu0 0.0
    %632 = vmatpush1.msra.mxu0 %v543
    %633 = vmatprep.subr.mxu0 0.0
    %634 = vmatpush1.msra.mxu0 %v544
    %635 = vmatprep.subr.mxu0 0.0
    %636 = vmatpush1.msra.mxu0 %v545
    %637 = vmatprep.subr.mxu0 0.0
    %638 = vmatpush1.msra.mxu0 %v546
    %639 = vmatprep.subr.mxu0 0.0
    %640 = vmatpush1.msra.mxu0 %v547
    %641 = vmatprep.subr.mxu0 0.0
    %642 = vmatpush1.msra.mxu0 %v548
    %643 = vmatprep.subr.mxu0 0.0
    %644 = vmatpush1.msra.mxu0 %v549
    %645 = vmatprep.subr.mxu0 0.0
    %646 = vmatpush1.msra.mxu0 %v550
    %647 = vmatprep.mubr.f32.mxu0 %v255
    %648 = vmatmul.mubr.f32.gmra.mrb[0].mxu0 %v254
    %v649 = vpop.f32.mrb[0].mxu0
    %v650 = vadd.f32 0.0, %v649
    %v651 = vpop.f32.mrb[0].mxu0
    %652 = vdwg.mxu0
    %653 = vmatprep.subr.mxu0 0.0
    %654 = vmatpush1.msra.mxu0 %v551
    %655 = vmatprep.subr.mxu0 0.0
    %656 = vmatpush1.msra.mxu0 %v552
    %657 = vmatprep.subr.mxu0 0.0
    %658 = vmatpush1.msra.mxu0 %v553
    %659 = vmatprep.subr.mxu0 0.0
    %660 = vmatpush1.msra.mxu0 %v554
    %661 = vmatprep.subr.mxu0 0.0
    %662 = vmatpush1.msra.mxu0 %v555
    %663 = vmatprep.subr.mxu0 0.0
    %664 = vmatpush1.msra.mxu0 %v556
    %665 = vmatprep.subr.mxu0 0.0
    %666 = vmatpush1.msra.mxu0 %v557
    %667 = vmatprep.subr.mxu0 0.0
    %668 = vmatpush1.msra.mxu0 %v558
    %669 = vmatprep.subr.mxu0 0.0
    %670 = vmatpush1.msra.mxu0 %v559
    %671 = vmatprep.subr.mxu0 0.0
    %672 = vmatpush1.msra.mxu0 %v560
    %673 = vmatprep.subr.mxu0 0.0
    %674 = vmatpush1.msra.mxu0 %v561
    %675 = vmatprep.subr.mxu0 0.0
    %676 = vmatpush1.msra.mxu0 %v562
    %677 = vmatprep.subr.mxu0 0.0
    %678 = vmatpush1.msra.mxu0 %v563
    %679 = vmatprep.subr.mxu0 0.0
    %680 = vmatpush1.msra.mxu0 %v564
    %681 = vmatprep.subr.mxu0 0.0
    %682 = vmatpush1.msra.mxu0 %v565
    %683 = vmatprep.subr.mxu0 0.0
    %684 = vmatpush1.msra.mxu0 %v566
    %685 = vmatprep.subr.mxu0 0.0
    %686 = vmatpush1.msra.mxu0 %v567
    %687 = vmatprep.subr.mxu0 0.0
    %688 = vmatpush1.msra.mxu0 %v568
    %689 = vmatprep.subr.mxu0 0.0
    %690 = vmatpush1.msra.mxu0 %v569
    %691 = vmatprep.subr.mxu0 0.0
    %692 = vmatpush1.msra.mxu0 %v570
    %693 = vmatprep.subr.mxu0 0.0
    %694 = vmatpush1.msra.mxu0 %v571
    %695 = vmatprep.subr.mxu0 0.0
    %696 = vmatpush1.msra.mxu0 %v572
    %697 = vmatprep.subr.mxu0 0.0
    %698 = vmatpush1.msra.mxu0 %v573
    %699 = vmatprep.subr.mxu0 0.0
    %700 = vmatpush1.msra.mxu0 %v574
    %701 = vmatprep.subr.mxu0 0.0
    %702 = vmatpush1.msra.mxu0 %v575
    %703 = vmatprep.subr.mxu0 0.0
    %704 = vmatpush1.msra.mxu0 %v576
    %705 = vmatprep.subr.mxu0 0.0
    %706 = vmatpush1.msra.mxu0 %v577
    %707 = vmatprep.subr.mxu0 0.0
    %708 = vmatpush1.msra.mxu0 %v578
    %709 = vmatprep.subr.mxu0 0.0
    %710 = vmatpush1.msra.mxu0 %v579
    %711 = vmatprep.subr.mxu0 0.0
    %712 = vmatpush1.msra.mxu0 %v580
    %713 = vmatprep.subr.mxu0 0.0
    %714 = vmatpush1.msra.mxu0 %v581
    %715 = vmatprep.subr.mxu0 0.0
    %716 = vmatpush1.msra.mxu0 %v582
    %717 = vmatprep.mubr.f32.mxu0 %v257
    %718 = vmatmul.mubr.f32.gmra.mrb[0].mxu0 %v256
    %v719 = vpop.f32.mrb[0].mxu0
    %v720 = vadd.f32 %v650, %v719
    %v721 = vpop.f32.mrb[0].mxu0
    %722 = vdwg.mxu0
    %vm723 = vcmask 15360
    %v724 = vsel %vm723, %v720, 0.0
    %725 = vadd.xlane.f32.xlu0 %v724
    %v726 = vpop.xlane.xlu0 %725
    %v727 = vrcp.pop 2.0
    %v728 = vmul.f32 %v726, %v727
    %v729 = vmul.f32 %v254, %v254
    %v730 = vmul.f32 %v255, %v255
    %v731 = vmul.f32 %v256, %v256
    %v732 = vmul.f32 %v257, %v257
    %v733 = vadd.f32 %v729, %v730
    %v734 = vadd.f32 %v733, %v731
    %v735 = vadd.f32 %v734, %v732
    %736 = vadd.xlane.f32.xlu0 %v735
    %v737 = vpop.xlane.xlu0 %736
    %v738 = vmul.f32 %v737, 0.001953125
    %v739 = vmul.f32 %v728, %v728
    %v740 = vsub.f32 %v738, %v739
    %v741 = vmax.f32 %v740, 0.0
    %v742 = vadd.f32 %v741, 1e-05
    %v743 = vrsqrt.pop %v742
    %v744 = vsub.f32 %v720, %v728
    %v745 = vld [vmem:[%s3] sm:$0xff]
    %v746 = vmul.f32 %v743, %v745
    %748 = vset.pattern.permute.xlu0 0
    %749 = vperm.xlu0 %748, %v746
    %v750 = vpop.permute.xlu0 %749
    %v752 = vmul.f32 %v744, %v750
    %v753 = vld [vmem:[%s4] sm:$0xff]
    %755 = vset.pattern.permute.xlu0 0
    %756 = vperm.xlu0 %755, %v753
    %v757 = vpop.permute.xlu0 %756
    %v759 = vadd.f32 %v752, %v757
    %v760 = vld [vmem:[%s5] sm:$0xff]
    %v761 = vld [vmem:[%s5 + $0x8] sm:$0x3]
    %v762 = vld [vmem:[%s6] sm:$0xff]
    %v763 = vld [vmem:[%s6 + $0x8] sm:$0x3]
    %765 = vset.pattern.permute.xlu0 0
    %766 = vperm.xlu0 %765, %v762
    %v767 = vpop.permute.xlu0 %766
    %770 = vset.pattern.permute.xlu0 0
    %771 = vperm.xlu0 %770, %v763
    %v772 = vpop.permute.xlu0 %771
    %vm774 = vcmask 64512
    %v776 = vsel %vm774, %v760, 0
    %v779 = vsel %vm774, %v761, 0
    %781 = vmatprep.subr.mxu0 0.0
    %782 = vmatpush1.msra.mxu0 %v759
    %783 = vmatprep.subr.mxu0 0.0
    %784 = vmatpush1.msra.mxu0 0.0
    %785 = vmatprep.subr.mxu0 0.0
    %786 = vmatpush1.msra.mxu0 0.0
    %787 = vmatprep.subr.mxu0 0.0
    %788 = vmatpush1.msra.mxu0 0.0
    %789 = vmatprep.subr.mxu0 0.0
    %790 = vmatpush1.msra.mxu0 0.0
    %791 = vmatprep.subr.mxu0 0.0
    %792 = vmatpush1.msra.mxu0 0.0
    %793 = vmatprep.subr.mxu0 0.0
    %794 = vmatpush1.msra.mxu0 0.0
    %795 = vmatprep.subr.mxu0 0.0
    %796 = vmatpush1.msra.mxu0 0.0
    %797 = vmatprep.subr.mxu0 0.0
    %798 = vmatpush1.msra.mxu0 0.0
    %799 = vmatprep.subr.mxu0 0.0
    %800 = vmatpush1.msra.mxu0 0.0
    %801 = vmatprep.subr.mxu0 0.0
    %802 = vmatpush1.msra.mxu0 0.0
    %803 = vmatprep.subr.mxu0 0.0
    %804 = vmatpush1.msra.mxu0 0.0
    %805 = vmatprep.subr.mxu0 0.0
    %806 = vmatpush1.msra.mxu0 0.0
    %807 = vmatprep.subr.mxu0 0.0
    %808 = vmatpush1.msra.mxu0 0.0
    %809 = vmatprep.subr.mxu0 0.0
    %810 = vmatpush1.msra.mxu0 0.0
    %811 = vmatprep.subr.mxu0 0.0
    %812 = vmatpush1.msra.mxu0 0.0
    %813 = vmatprep.subr.mxu0 0.0
    %814 = vmatpush1.msra.mxu0 0.0
    %815 = vmatprep.subr.mxu0 0.0
    %816 = vmatpush1.msra.mxu0 0.0
    %817 = vmatprep.subr.mxu0 0.0
    %818 = vmatpush1.msra.mxu0 0.0
    %819 = vmatprep.subr.mxu0 0.0
    %820 = vmatpush1.msra.mxu0 0.0
    %821 = vmatprep.subr.mxu0 0.0
    %822 = vmatpush1.msra.mxu0 0.0
    %823 = vmatprep.subr.mxu0 0.0
    %824 = vmatpush1.msra.mxu0 0.0
    %825 = vmatprep.subr.mxu0 0.0
    %826 = vmatpush1.msra.mxu0 0.0
    %827 = vmatprep.subr.mxu0 0.0
    %828 = vmatpush1.msra.mxu0 0.0
    %829 = vmatprep.subr.mxu0 0.0
    %830 = vmatpush1.msra.mxu0 0.0
    %831 = vmatprep.subr.mxu0 0.0
    %832 = vmatpush1.msra.mxu0 0.0
    %833 = vmatprep.subr.mxu0 0.0
    %834 = vmatpush1.msra.mxu0 0.0
    %835 = vmatprep.subr.mxu0 0.0
    %836 = vmatpush1.msra.mxu0 0.0
    %837 = vmatprep.subr.mxu0 0.0
    %838 = vmatpush1.msra.mxu0 0.0
    %839 = vmatprep.subr.mxu0 0.0
    %840 = vmatpush1.msra.mxu0 0.0
    %841 = vmatprep.subr.mxu0 0.0
    %842 = vmatpush1.msra.mxu0 0.0
    %843 = vmatprep.subr.mxu0 0.0
    %844 = vmatpush1.msra.mxu0 0.0
    %845 = vmatprep.mubr.f32.mxu0 0.0
    %846 = vmatmul.mubr.f32.gmra.mrb[0].mxu0 %v776
    %v847 = vpop.f32.mrb[0].mxu0
    %v848 = vadd.f32 %v767, %v847
    %v849 = vpop.f32.mrb[0].mxu0
    %850 = vmatprep.mubr.f32.mxu0 0.0
    %851 = vmatmul.mubr.f32.gmra.mrb[0].mxu0 %v779
    %v852 = vpop.f32.mrb[0].mxu0
    %v853 = vadd.f32 %v772, %v852
    %v854 = vpop.f32.mrb[0].mxu0
    %855 = vdwg.mxu0
    %v856 = vsel %vm723, %v848, -inf
    %vm857 = vcmask 9216
    %v858 = vsel %vm857, %v853, -inf
    %v859 = vmax.f32 %v856, %v858
    %v860 = vrot.slane %v859, 4
    %v861 = vmax.f32 %v859, %v860
    %v862 = vrot.slane %v861, 2
    %v863 = vmax.f32 %v861, %v862
    %v864 = vrot.slane %v863, 1
    %v865 = vmax.f32 %v863, %v864
    %v866 = vsub.f32 %v848, %v865
    %v867 = vsub.f32 %v853, %v865
    %v868 = vmul.f32 %v866, 1.442695
    %v869 = vpow.pop %v868
    %v870 = vmul.f32 %v867, 1.442695
    %v871 = vpow.pop %v870
    %v872 = vsel %vm723, %v869, 0.0
    %v873 = vsel %vm857, %v871, 0.0
    %v874 = vadd.f32 %v872, %v873
    %v875 = vrot.slane %v874, 4
    %v876 = vadd.f32 %v874, %v875
    %v877 = vrot.slane %v876, 2
    %v878 = vadd.f32 %v876, %v877
    %v879 = vrot.slane %v878, 1
    %v880 = vadd.f32 %v878, %v879
    %v881 = vlog2.pop %v880
    %v882 = vmul.f32 %v881, 0.6931472
    %v883 = vadd.f32 %v865, %v882
    %v884 = vld [vmem:[%s0] sm:$0x1]
    %v885 = vlaneseq
    %v886 = vshrl.u32 %v885, 7
    %v887 = vsub.s32 0, %v886
    %v888 = vrot.slane %v884, %v887
    %vm889 = vcmp.eq.s32.totalorder %v259, %v888
    %vm890 = vcmp.eq.s32.totalorder %v260, %v888
    %v891 = vsel %vm889, %v848, 0.0
    %v892 = vsel %vm890, %v853, 0.0
    %v893 = vsel %vm723, %v891, 0.0
    %v894 = vsel %vm857, %v892, 0.0
    %v895 = vadd.f32 %v893, %v894
    %v896 = vrot.slane %v895, 4
    %v897 = vadd.f32 %v895, %v896
    %v898 = vrot.slane %v897, 2
    %v899 = vadd.f32 %v897, %v898
    %v900 = vrot.slane %v899, 1
    %v901 = vadd.f32 %v899, %v900
    %v902 = vsub.f32 %v883, %v901
    %vm903 = vcmask 8192
    %v904 = vsel %vm903, %v902, 0.0
    %905 = vadd.xlane.f32.xlu0 %v904
    %v906 = vpop.xlane.xlu0 %905
    %v907 = vrot.slane %v906, 4
    %v908 = vadd.f32 %v906, %v907
    %v909 = vrot.slane %v908, 2
    %v910 = vadd.f32 %v908, %v909
    %v911 = vrot.slane %v910, 1
    %v912 = vadd.f32 %v910, %v911
    %s913 = vtos %v912
    %s914 = smul.f32 %s913, 0.5
    %s915 = sadd.f32 %s914, 0.0
    %v916 = vld [vmem:[%s8] sm:$0xff]
    %v917 = vld [vmem:[%s8 + $0x8] sm:$0xff]
    %v918 = vld [vmem:[%s7] sm:$0xf]
    %v919 = vld [vmem:[%s7 + $0x4] sm:$0xf]
    %v920 = vld [vmem:[%s7 + $0x8] sm:$0xf]
    %v921 = vld [vmem:[%s7 + $0xc] sm:$0xf]
    %v922 = vld [vmem:[%s7 + $0x10] sm:$0xf]
    %v923 = vld [vmem:[%s7 + $0x14] sm:$0xf]
    %v924 = vld [vmem:[%s7 + $0x18] sm:$0xf]
    %v925 = vld [vmem:[%s7 + $0x1c] sm:$0xf]
    %v926 = vld [vmem:[%s7 + $0x20] sm:$0xf]
    %v927 = vld [vmem:[%s7 + $0x24] sm:$0xf]
    %v928 = vld [vmem:[%s7 + $0x28] sm:$0xf]
    %v929 = vld [vmem:[%s7 + $0x2c] sm:$0xf]
    %v930 = vld [vmem:[%s7 + $0x30] sm:$0xf]
    %v931 = vld [vmem:[%s7 + $0x34] sm:$0xf]
    %v932 = vld [vmem:[%s7 + $0x38] sm:$0xf]
    %v933 = vld [vmem:[%s7 + $0x3c] sm:$0xf]
    %v934 = vld [vmem:[%s7 + $0x40] sm:$0xf]
    %v935 = vld [vmem:[%s7 + $0x44] sm:$0xf]
    %v938 = vunpack.c.l.b16 %v916
    %v939 = vunpack.c.h.b16 %v916
    %v940 = vunpack.c.l.b16 %v917
    %v941 = vunpack.c.h.b16 %v917
    %v942 = vpack.c.b16 %v940, %v938
    %v943 = vpack.c.b16 %v941, %v939
    %v963 = vunpack.c.l.b16 %v918
    %v964 = vunpack.c.l.b16 %v919
    %v965 = vunpack.c.l.b16 %v920
    %v966 = vunpack.c.l.b16 %v921
    %v967 = vunpack.c.l.b16 %v922
    %v968 = vunpack.c.l.b16 %v923
    %v969 = vunpack.c.l.b16 %v924
    %v970 = vunpack.c.l.b16 %v925
    %v971 = vunpack.c.l.b16 %v926
    %v972 = vunpack.c.l.b16 %v927
    %v973 = vunpack.c.l.b16 %v928
    %v974 = vunpack.c.l.b16 %v929
    %v975 = vunpack.c.l.b16 %v930
    %v976 = vunpack.c.l.b16 %v931
    %v977 = vunpack.c.l.b16 %v932
    %v978 = vunpack.c.l.b16 %v933
    %v979 = vunpack.c.l.b16 %v934
    %v980 = vunpack.c.l.b16 %v935
    %v981 = vpack.c.b16 %v964, %v963
    %v982 = vpack.c.b16 %v966, %v965
    %v983 = vpack.c.b16 %v968, %v967
    %v984 = vpack.c.b16 %v970, %v969
    %v985 = vpack.c.b16 %v972, %v971
    %v986 = vpack.c.b16 %v974, %v973
    %v987 = vpack.c.b16 %v976, %v975
    %v988 = vpack.c.b16 %v978, %v977
    %v989 = vpack.c.b16 %v980, %v979
    %vm999 = vcmask 130048
    %v1001 = vsel %vm999, %v943, 0
    %1003 = vmatprep.subr.bf16.mxu0 0
    %1004 = vmatpush1.bf16.msra.mxu0 %v981
    %1005 = vmatprep.subr.bf16.mxu0 0
    %1006 = vmatpush1.bf16.msra.mxu0 %v982
    %1007 = vmatprep.subr.bf16.mxu0 0
    %1008 = vmatpush1.bf16.msra.mxu0 %v983
    %1009 = vmatprep.subr.bf16.mxu0 0
    %1010 = vmatpush1.bf16.msra.mxu0 %v984
    %1011 = vmatprep.subr.bf16.mxu0 0
    %1012 = vmatpush1.bf16.msra.mxu0 %v985
    %1013 = vmatprep.subr.bf16.mxu0 0
    %1014 = vmatpush1.bf16.msra.mxu0 %v986
    %1015 = vmatprep.subr.bf16.mxu0 0
    %1016 = vmatpush1.bf16.msra.mxu0 %v987
    %1017 = vmatprep.subr.bf16.mxu0 0
    %1018 = vmatpush1.bf16.msra.mxu0 %v988
    %1019 = vmatprep.subr.bf16.mxu0 0
    %1020 = vmatpush1.bf16.msra.mxu0 %v989
    %1021 = vmatprep.subr.bf16.mxu0 0
    %1022 = vmatpush1.bf16.msra.mxu0 0
    %1023 = vmatprep.subr.bf16.mxu0 0
    %1024 = vmatpush1.bf16.msra.mxu0 0
    %1025 = vmatprep.subr.bf16.mxu0 0
    %1026 = vmatpush1.bf16.msra.mxu0 0
    %1027 = vmatprep.subr.bf16.mxu0 0
    %1028 = vmatpush1.bf16.msra.mxu0 0
    %1029 = vmatprep.subr.bf16.mxu0 0
    %1030 = vmatpush1.bf16.msra.mxu0 0
    %1031 = vmatprep.subr.bf16.mxu0 0
    %1032 = vmatpush1.bf16.msra.mxu0 0
    %1033 = vmatprep.subr.bf16.mxu0 0
    %1034 = vmatpush1.bf16.msra.mxu0 0
    %1035 = vmatprep.mubr.bf16.mxu0 %v1001
    %1036 = vmatmul.mubr.bf16.gmra.mrb[0].mxu0 %v942
    %v1037 = vpop.f32.mrb[0].mxu0
    %v1038 = vadd.f32 0.0, %v1037
    %v1039 = vpop.f32.mrb[0].mxu0
    %v1040 = vpop.f32.mrb[0].mxu0
    %v1041 = vadd.f32 0.0, %v1040
    %v1042 = vpop.f32.mrb[0].mxu0
    %1043 = vdwg.mxu0
    %v1044 = vmax.f32 %v1038, 0.0
    %v1045 = vmax.f32 %v1041, 0.0
    %v1046 = vmul.u32 %v324, 64
    %vm1047 = vcmp.ge.s32.totalorder %v259, %v1046
    %vm1048 = vcmp.ge.s32.totalorder %v260, %v1046
    %vm1049 = vcmp.ge.s32.totalorder %v261, %v1046
    %vm1050 = vcmp.ge.s32.totalorder %v262, %v1046
    %vm1051 = vcmp.ge.s32.totalorder %v263, %v1046
    %vm1052 = vcmp.ge.s32.totalorder %v264, %v1046
    %vm1053 = vcmp.ge.s32.totalorder %v265, %v1046
    %vm1054 = vcmp.ge.s32.totalorder %v266, %v1046
    %vm1055 = vcmp.ge.s32.totalorder %v267, %v1046
    %vm1056 = vcmp.ge.s32.totalorder %v268, %v1046
    %vm1057 = vcmp.ge.s32.totalorder %v269, %v1046
    %vm1058 = vcmp.ge.s32.totalorder %v270, %v1046
    %vm1059 = vcmp.ge.s32.totalorder %v271, %v1046
    %vm1060 = vcmp.ge.s32.totalorder %v272, %v1046
    %vm1061 = vcmp.ge.s32.totalorder %v273, %v1046
    %vm1062 = vcmp.ge.s32.totalorder %v274, %v1046
    %v1063 = vadd.s32 %v1046, 64
    %vm1064 = vcmp.lt.s32.totalorder %v259, %v1063
    %vm1065 = vcmp.lt.s32.totalorder %v260, %v1063
    %vm1066 = vcmp.lt.s32.totalorder %v261, %v1063
    %vm1067 = vcmp.lt.s32.totalorder %v262, %v1063
    %vm1068 = vcmp.lt.s32.totalorder %v263, %v1063
    %vm1069 = vcmp.lt.s32.totalorder %v264, %v1063
    %vm1070 = vcmp.lt.s32.totalorder %v265, %v1063
    %vm1071 = vcmp.lt.s32.totalorder %v266, %v1063
    %vm1072 = vcmp.lt.s32.totalorder %v267, %v1063
    %vm1073 = vcmp.lt.s32.totalorder %v268, %v1063
    %vm1074 = vcmp.lt.s32.totalorder %v269, %v1063
    %vm1075 = vcmp.lt.s32.totalorder %v270, %v1063
    %vm1076 = vcmp.lt.s32.totalorder %v271, %v1063
    %vm1077 = vcmp.lt.s32.totalorder %v272, %v1063
    %vm1078 = vcmp.lt.s32.totalorder %v273, %v1063
    %vm1079 = vcmp.lt.s32.totalorder %v274, %v1063
    %vm1080 = vmand %vm1047, %vm1064
    %vm1081 = vmand %vm1048, %vm1065
    %vm1082 = vmand %vm1049, %vm1066
    %vm1083 = vmand %vm1050, %vm1067
    %vm1084 = vmand %vm1051, %vm1068
    %vm1085 = vmand %vm1052, %vm1069
    %vm1086 = vmand %vm1053, %vm1070
    %vm1087 = vmand %vm1054, %vm1071
    %vm1088 = vmand %vm1055, %vm1072
    %vm1089 = vmand %vm1056, %vm1073
    %vm1090 = vmand %vm1057, %vm1074
    %vm1091 = vmand %vm1058, %vm1075
    %vm1092 = vmand %vm1059, %vm1076
    %vm1093 = vmand %vm1060, %vm1077
    %vm1094 = vmand %vm1061, %vm1078
    %vm1095 = vmand %vm1062, %vm1079
    %v1096 = vsel %vm1080, 0.015625, 0.0
    %v1097 = vsel %vm1081, 0.015625, 0.0
    %v1098 = vsel %vm1082, 0.015625, 0.0
    %v1099 = vsel %vm1083, 0.015625, 0.0
    %v1100 = vsel %vm1084, 0.015625, 0.0
    %v1101 = vsel %vm1085, 0.015625, 0.0
    %v1102 = vsel %vm1086, 0.015625, 0.0
    %v1103 = vsel %vm1087, 0.015625, 0.0
    %v1104 = vsel %vm1088, 0.015625, 0.0
    %v1105 = vsel %vm1089, 0.015625, 0.0
    %v1106 = vsel %vm1090, 0.015625, 0.0
    %v1107 = vsel %vm1091, 0.015625, 0.0
    %v1108 = vsel %vm1092, 0.015625, 0.0
    %v1109 = vsel %vm1093, 0.015625, 0.0
    %v1110 = vsel %vm1094, 0.015625, 0.0
    %v1111 = vsel %vm1095, 0.015625, 0.0
    %1112 = vmatprep.subr.mxu0 0.0
    %1113 = vmatpush1.msra.mxu0 %v1096
    %1114 = vmatprep.subr.mxu0 0.0
    %1115 = vmatpush1.msra.mxu0 %v1097
    %1116 = vmatprep.subr.mxu0 0.0
    %1117 = vmatpush1.msra.mxu0 %v1098
    %1118 = vmatprep.subr.mxu0 0.0
    %1119 = vmatpush1.msra.mxu0 %v1099
    %1120 = vmatprep.subr.mxu0 0.0
    %1121 = vmatpush1.msra.mxu0 %v1100
    %1122 = vmatprep.subr.mxu0 0.0
    %1123 = vmatpush1.msra.mxu0 %v1101
    %1124 = vmatprep.subr.mxu0 0.0
    %1125 = vmatpush1.msra.mxu0 %v1102
    %1126 = vmatprep.subr.mxu0 0.0
    %1127 = vmatpush1.msra.mxu0 %v1103
    %1128 = vmatprep.subr.mxu0 0.0
    %1129 = vmatpush1.msra.mxu0 %v1104
    %1130 = vmatprep.subr.mxu0 0.0
    %1131 = vmatpush1.msra.mxu0 %v1105
    %1132 = vmatprep.subr.mxu0 0.0
    %1133 = vmatpush1.msra.mxu0 %v1106
    %1134 = vmatprep.subr.mxu0 0.0
    %1135 = vmatpush1.msra.mxu0 %v1107
    %1136 = vmatprep.subr.mxu0 0.0
    %1137 = vmatpush1.msra.mxu0 %v1108
    %1138 = vmatprep.subr.mxu0 0.0
    %1139 = vmatpush1.msra.mxu0 %v1109
    %1140 = vmatprep.subr.mxu0 0.0
    %1141 = vmatpush1.msra.mxu0 %v1110
    %1142 = vmatprep.subr.mxu0 0.0
    %1143 = vmatpush1.msra.mxu0 %v1111
    %1144 = vmatprep.subr.mxu0 0.0
    %1145 = vmatpush1.msra.mxu0 0.0
    %1146 = vmatprep.subr.mxu0 0.0
    %1147 = vmatpush1.msra.mxu0 0.0
    %1148 = vmatprep.subr.mxu0 0.0
    %1149 = vmatpush1.msra.mxu0 0.0
    %1150 = vmatprep.subr.mxu0 0.0
    %1151 = vmatpush1.msra.mxu0 0.0
    %1152 = vmatprep.subr.mxu0 0.0
    %1153 = vmatpush1.msra.mxu0 0.0
    %1154 = vmatprep.subr.mxu0 0.0
    %1155 = vmatpush1.msra.mxu0 0.0
    %1156 = vmatprep.subr.mxu0 0.0
    %1157 = vmatpush1.msra.mxu0 0.0
    %1158 = vmatprep.subr.mxu0 0.0
    %1159 = vmatpush1.msra.mxu0 0.0
    %1160 = vmatprep.subr.mxu0 0.0
    %1161 = vmatpush1.msra.mxu0 0.0
    %1162 = vmatprep.subr.mxu0 0.0
    %1163 = vmatpush1.msra.mxu0 0.0
    %1164 = vmatprep.subr.mxu0 0.0
    %1165 = vmatpush1.msra.mxu0 0.0
    %1166 = vmatprep.subr.mxu0 0.0
    %1167 = vmatpush1.msra.mxu0 0.0
    %1168 = vmatprep.subr.mxu0 0.0
    %1169 = vmatpush1.msra.mxu0 0.0
    %1170 = vmatprep.subr.mxu0 0.0
    %1171 = vmatpush1.msra.mxu0 0.0
    %1172 = vmatprep.subr.mxu0 0.0
    %1173 = vmatpush1.msra.mxu0 0.0
    %1174 = vmatprep.subr.mxu0 0.0
    %1175 = vmatpush1.msra.mxu0 0.0
    %1176 = vmatprep.mubr.f32.mxu0 0.0
    %1177 = vmatmul.mubr.f32.gmra.mrb[0].mxu0 %v1044
    %v1178 = vpop.f32.mrb[0].mxu0
    %v1179 = vadd.f32 0.0, %v1178
    %v1180 = vpop.f32.mrb[0].mxu0
    %1181 = vmatprep.mubr.f32.mxu0 0.0
    %1182 = vmatmul.mubr.f32.gmra.mrb[0].mxu0 %v1045
    %v1183 = vpop.f32.mrb[0].mxu0
    %v1184 = vadd.f32 0.0, %v1183
    %v1185 = vpop.f32.mrb[0].mxu0
    %1186 = vdwg.mxu0
    %v1187 = vsel %vm723, %v1179, 0.0
    %1188 = vadd.xlane.f32.xlu0 %v1187
    %v1189 = vpop.xlane.xlu0 %1188
    %v1190 = vsel %vm723, %v1184, 0.0
    %1191 = vadd.xlane.f32.xlu0 %v1190
    %v1192 = vpop.xlane.xlu0 %1191
    %v1193 = vmul.f32 %v1189, %v727
    %v1194 = vmul.f32 %v1192, %v727
    %v1195 = vmul.f32 %v1044, %v1044
    %v1196 = vmul.f32 %v1045, %v1045
    %1197 = vadd.xlane.f32.xlu0 %v1195
    %v1198 = vpop.xlane.xlu0 %1197
    %1199 = vadd.xlane.f32.xlu0 %v1196
    %v1200 = vpop.xlane.xlu0 %1199
    %v1201 = vmul.f32 %v1198, 0.0078125
    %v1202 = vmul.f32 %v1200, 0.0078125
    %v1203 = vmul.f32 %v1193, %v1193
    %v1204 = vmul.f32 %v1194, %v1194
    %v1205 = vsub.f32 %v1201, %v1203
    %v1206 = vsub.f32 %v1202, %v1204
    %v1207 = vmax.f32 %v1205, 0.0
    %v1208 = vmax.f32 %v1206, 0.0
    %v1209 = vadd.f32 %v1207, 1e-05
    %v1210 = vadd.f32 %v1208, 1e-05
    %v1211 = vrsqrt.pop %v1209
    %v1212 = vrsqrt.pop %v1210
    %v1213 = vsub.f32 %v1179, %v1193
    %v1214 = vsub.f32 %v1184, %v1194
    %v1215 = vld [vmem:[%s9] sm:$0xff]
    %v1216 = vld [vmem:[%s9 + $0x8] sm:$0xff]
    %v1217 = vmul.f32 %v1211, %v1215
    %v1218 = vmul.f32 %v1212, %v1216
    %1220 = vset.pattern.permute.xlu0 0
    %1221 = vperm.xlu0 %1220, %v1217
    %v1222 = vpop.permute.xlu0 %1221
    %1225 = vset.pattern.permute.xlu0 0
    %1226 = vperm.xlu0 %1225, %v1218
    %v1227 = vpop.permute.xlu0 %1226
    %v1229 = vmul.f32 %v1213, %v1222
    %v1230 = vmul.f32 %v1214, %v1227
    %v1231 = vld [vmem:[%s10] sm:$0xff]
    %v1232 = vld [vmem:[%s10 + $0x8] sm:$0xff]
    %1234 = vset.pattern.permute.xlu0 0
    %1235 = vperm.xlu0 %1234, %v1231
    %v1236 = vpop.permute.xlu0 %1235
    %1239 = vset.pattern.permute.xlu0 0
    %1240 = vperm.xlu0 %1239, %v1232
    %v1241 = vpop.permute.xlu0 %1240
    %v1243 = vadd.f32 %v1229, %v1236
    %v1244 = vadd.f32 %v1230, %v1241
    %v1245 = vld [vmem:[%s11] sm:$0xff]
    %v1246 = vld [vmem:[%s11 + $0x8] sm:$0x3]
    %v1247 = vld [vmem:[%s12] sm:$0xff]
    %v1248 = vld [vmem:[%s12 + $0x8] sm:$0x3]
    %1250 = vset.pattern.permute.xlu0 0
    %1251 = vperm.xlu0 %1250, %v1247
    %v1252 = vpop.permute.xlu0 %1251
    %1255 = vset.pattern.permute.xlu0 0
    %1256 = vperm.xlu0 %1255, %v1248
    %v1257 = vpop.permute.xlu0 %1256
    %v1260 = vsel %vm999, %v1245, 0
    %v1263 = vsel %vm999, %v1246, 0
    %1265 = vmatprep.subr.mxu0 0.0
    %1266 = vmatpush1.msra.mxu0 %v1243
    %1267 = vmatprep.subr.mxu0 0.0
    %1268 = vmatpush1.msra.mxu0 %v1244
    %1269 = vmatprep.subr.mxu0 0.0
    %1270 = vmatpush1.msra.mxu0 0.0
    %1271 = vmatprep.subr.mxu0 0.0
    %1272 = vmatpush1.msra.mxu0 0.0
    %1273 = vmatprep.subr.mxu0 0.0
    %1274 = vmatpush1.msra.mxu0 0.0
    %1275 = vmatprep.subr.mxu0 0.0
    %1276 = vmatpush1.msra.mxu0 0.0
    %1277 = vmatprep.subr.mxu0 0.0
    %1278 = vmatpush1.msra.mxu0 0.0
    %1279 = vmatprep.subr.mxu0 0.0
    %1280 = vmatpush1.msra.mxu0 0.0
    %1281 = vmatprep.subr.mxu0 0.0
    %1282 = vmatpush1.msra.mxu0 0.0
    %1283 = vmatprep.subr.mxu0 0.0
    %1284 = vmatpush1.msra.mxu0 0.0
    %1285 = vmatprep.subr.mxu0 0.0
    %1286 = vmatpush1.msra.mxu0 0.0
    %1287 = vmatprep.subr.mxu0 0.0
    %1288 = vmatpush1.msra.mxu0 0.0
    %1289 = vmatprep.subr.mxu0 0.0
    %1290 = vmatpush1.msra.mxu0 0.0
    %1291 = vmatprep.subr.mxu0 0.0
    %1292 = vmatpush1.msra.mxu0 0.0
    %1293 = vmatprep.subr.mxu0 0.0
    %1294 = vmatpush1.msra.mxu0 0.0
    %1295 = vmatprep.subr.mxu0 0.0
    %1296 = vmatpush1.msra.mxu0 0.0
    %1297 = vmatprep.subr.mxu0 0.0
    %1298 = vmatpush1.msra.mxu0 0.0
    %1299 = vmatprep.subr.mxu0 0.0
    %1300 = vmatpush1.msra.mxu0 0.0
    %1301 = vmatprep.subr.mxu0 0.0
    %1302 = vmatpush1.msra.mxu0 0.0
    %1303 = vmatprep.subr.mxu0 0.0
    %1304 = vmatpush1.msra.mxu0 0.0
    %1305 = vmatprep.subr.mxu0 0.0
    %1306 = vmatpush1.msra.mxu0 0.0
    %1307 = vmatprep.subr.mxu0 0.0
    %1308 = vmatpush1.msra.mxu0 0.0
    %1309 = vmatprep.subr.mxu0 0.0
    %1310 = vmatpush1.msra.mxu0 0.0
    %1311 = vmatprep.subr.mxu0 0.0
    %1312 = vmatpush1.msra.mxu0 0.0
    %1313 = vmatprep.subr.mxu0 0.0
    %1314 = vmatpush1.msra.mxu0 0.0
    %1315 = vmatprep.subr.mxu0 0.0
    %1316 = vmatpush1.msra.mxu0 0.0
    %1317 = vmatprep.subr.mxu0 0.0
    %1318 = vmatpush1.msra.mxu0 0.0
    %1319 = vmatprep.subr.mxu0 0.0
    %1320 = vmatpush1.msra.mxu0 0.0
    %1321 = vmatprep.subr.mxu0 0.0
    %1322 = vmatpush1.msra.mxu0 0.0
    %1323 = vmatprep.subr.mxu0 0.0
    %1324 = vmatpush1.msra.mxu0 0.0
    %1325 = vmatprep.subr.mxu0 0.0
    %1326 = vmatpush1.msra.mxu0 0.0
    %1327 = vmatprep.subr.mxu0 0.0
    %1328 = vmatpush1.msra.mxu0 0.0
    %1329 = vmatprep.mubr.f32.mxu0 0.0
    %1330 = vmatmul.mubr.f32.gmra.mrb[0].mxu0 %v1260
    %v1331 = vpop.f32.mrb[0].mxu0
    %v1332 = vadd.f32 %v1252, %v1331
    %v1333 = vpop.f32.mrb[0].mxu0
    %1334 = vmatprep.mubr.f32.mxu0 0.0
    %1335 = vmatmul.mubr.f32.gmra.mrb[0].mxu0 %v1263
    %v1336 = vpop.f32.mrb[0].mxu0
    %v1337 = vadd.f32 %v1257, %v1336
    %v1338 = vpop.f32.mrb[0].mxu0
    %1339 = vdwg.mxu0
    %v1340 = vsel %vm723, %v1332, -inf
    %v1341 = vsel %vm857, %v1337, -inf
    %v1342 = vmax.f32 %v1340, %v1341
    %v1343 = vrot.slane %v1342, 4
    %v1344 = vmax.f32 %v1342, %v1343
    %v1345 = vrot.slane %v1344, 2
    %v1346 = vmax.f32 %v1344, %v1345
    %v1347 = vrot.slane %v1346, 1
    %v1348 = vmax.f32 %v1346, %v1347
    %v1349 = vsub.f32 %v1332, %v1348
    %v1350 = vsub.f32 %v1337, %v1348
    %v1351 = vmul.f32 %v1349, 1.442695
    %v1352 = vpow.pop %v1351
    %v1353 = vmul.f32 %v1350, 1.442695
    %v1354 = vpow.pop %v1353
    %v1355 = vsel %vm723, %v1352, 0.0
    %v1356 = vsel %vm857, %v1354, 0.0
    %v1357 = vadd.f32 %v1355, %v1356
    %v1358 = vrot.slane %v1357, 4
    %v1359 = vadd.f32 %v1357, %v1358
    %v1360 = vrot.slane %v1359, 2
    %v1361 = vadd.f32 %v1359, %v1360
    %v1362 = vrot.slane %v1361, 1
    %v1363 = vadd.f32 %v1361, %v1362
    %v1364 = vlog2.pop %v1363
    %v1365 = vmul.f32 %v1364, 0.6931472
    %v1366 = vadd.f32 %v1348, %v1365
    %v1367 = vsel %vm889, %v1332, 0.0
    %v1368 = vsel %vm890, %v1337, 0.0
    %v1369 = vsel %vm723, %v1367, 0.0
    %v1370 = vsel %vm857, %v1368, 0.0
    %v1371 = vadd.f32 %v1369, %v1370
    %v1372 = vrot.slane %v1371, 4
    %v1373 = vadd.f32 %v1371, %v1372
    %v1374 = vrot.slane %v1373, 2
    %v1375 = vadd.f32 %v1373, %v1374
    %v1376 = vrot.slane %v1375, 1
    %v1377 = vadd.f32 %v1375, %v1376
    %v1378 = vsub.f32 %v1366, %v1377
    %v1379 = vsel %vm903, %v1378, 0.0
    %1380 = vadd.xlane.f32.xlu0 %v1379
    %v1381 = vpop.xlane.xlu0 %1380
    %v1382 = vrot.slane %v1381, 4
    %v1383 = vadd.f32 %v1381, %v1382
    %v1384 = vrot.slane %v1383, 2
    %v1385 = vadd.f32 %v1383, %v1384
    %v1386 = vrot.slane %v1385, 1
    %v1387 = vadd.f32 %v1385, %v1386
    %s1388 = vtos %v1387
    %s1389 = smul.f32 %s1388, 0.5
    %s1390 = sadd.f32 %s915, %s1389
    %s1391 = scalar_lea.smem [#allocation2], 0
    %1392 = sst [smem:[%s1391]] %s1390
    // Predicated region
    $region54: #{scb_classifier_forward.1} parent=1 // pred_check
      _
    $region55: #{scb_classifier_forward.1} parent=1 // pred_check_branch
      %1394 = sbr.rel (0) target = $region57
    $region56: #{scb_classifier_forward.1} parent=1 // pred_region
      %s1396 = ssub.s32 16, 16
      %1397 = vsyncadd [#allocation3], %s1396
      %1400 = dma.smem_to_hbm [#allocation2], 16, %s13, [#allocation3]
    $region57: #{scb_classifier_forward.1} parent=1 // pred_fallthru
      _
    // Predicated region
    $region58: #{scb_classifier_forward.1} parent=1 // pred_check
      _
    $region59: #{scb_classifier_forward.1} parent=1 // pred_check_branch
      %1402 = sbr.rel (0) target = $region61
    $region60: #{scb_classifier_forward.1} parent=1 // pred_region
      %1403 = dma.done [#allocation3], 16
    $region61: #{scb_classifier_forward.1} parent=1 // pred_fallthru
      _
    %1404 = sfence
    %1405 = vsyncpa [#allocation3], 1

</llo_original>
